<compile_context>
chip_gen: v7x
topology: tpu7x:2x2x1
jax: 0.10.0
libtpu: 0.0.40
codegen_flags: <defaults>
</compile_context>

<pallas_src>
import functools

import jax
import jax.numpy as jnp
from jax import lax
from jax.experimental import pallas as pl
from jax.experimental.pallas import tpu as pltpu


def _round_up(x, m):
    return ((x + m - 1) // m) * m


def _bf16_exp_ok():
    """bf16 EUP (transcendental) path exists on v6e / v7x, not on v5e and older."""
    try:
        kind = jax.devices()[0].device_kind.lower()
    except Exception:
        return False
    return ("v6" in kind) or ("v7" in kind) or ("7x" in kind)


# ---------------------------------------------------------------------------
# Kernel 1: qkv = x @ W_fused^T + b_fused, written head-major & lane-padded.
# ---------------------------------------------------------------------------
def _fused_qkv_kernel(x_ref, wf_ref, bf_ref, qkv_ref, *, n_heads, hd_p):
    # x_ref: (1, t_r, Dp) bf16; wf_ref: (Dp, 3*H*hd_p) bf16; bf_ref: (1, 3*H*hd_p) f32
    # qkv_ref: (1, 3, H, t_r, hd_p) bf16  (head-major, per-head lane-padded)
    y = jnp.dot(x_ref[0], wf_ref[...], preferred_element_type=jnp.float32)
    y = (y + bf_ref[...]).astype(qkv_ref.dtype)
    for s in range(3):                        # q / k / v sections
        for h in range(n_heads):              # 128-lane-aligned slices: free vreg selects
            lo = (s * n_heads + h) * hd_p
            qkv_ref[0, s, h] = y[:, lo:lo + hd_p]


# ---------------------------------------------------------------------------
# Kernel 2a: single kv tile (whole sequence) -> direct softmax + fused proj.
# Grid: (B, num_q, H); heads are a grid axis, output proj accumulated in VMEM.
# ---------------------------------------------------------------------------
def _attn_proj_single_kernel(q_ref, k_ref, v_ref, wp_ref, bp_ref, o_ref, out_acc,
                             *, hd_p, t_actual, exp_dtype):
    h = pl.program_id(2)

    q = q_ref[0, 0, 0]                        # (t_q, hd_p) bf16, scale pre-folded
    k = k_ref[0, 0, 0]                        # (t_kv, hd_p) bf16
    v = v_ref[0, 0, 0]                        # (t_kv, hd_p) bf16
    t_kv = k.shape[0]

    s = lax.dot_general(q, k, (((1,), (1,)), ((), ())),
                        preferred_element_type=jnp.float32)          # (t_q, t_kv)
    if t_actual != t_kv:                      # mask padded kv positions (static check)
        col = lax.broadcasted_iota(jnp.int32, (1, t_kv), 1)
        s = jnp.where(col < t_actual, s, jnp.float32(-1e30))

    m = jnp.max(s, axis=-1, keepdims=True)
    p = jnp.exp((s - m).astype(exp_dtype))
    l = jnp.sum(p.astype(jnp.float32), axis=-1, keepdims=True)
    wav = jnp.dot(p.astype(jnp.bfloat16), v, preferred_element_type=jnp.float32)
    wav = wav * pl.reciprocal(l, approx=True)                        # (t_q, hd_p) f32

    off = pl.multiple_of(h * hd_p, hd_p)
    contrib = jnp.dot(wav.astype(jnp.bfloat16), wp_ref[pl.ds(off, hd_p), :],
                      preferred_element_type=jnp.float32)            # (t_q, Dp)

    @pl.when(h == 0)
    def _():
        out_acc[...] = jnp.zeros_like(out_acc)

    out_acc[...] += contrib

    @pl.when(h == pl.num_programs(2) - 1)
    def _():
        o_ref[0] = (out_acc[...] + bp_ref[...]).astype(o_ref.dtype)


# ---------------------------------------------------------------------------
# Kernel 2b: streaming (flash-style) over kv tiles + fused output projection.
# Grid: (B, num_q, H, num_kv); kv reduction axis last.
# ---------------------------------------------------------------------------
def _attn_proj_stream_kernel(q_ref, k_ref, v_ref, wp_ref, bp_ref, o_ref,
                             m_sc, l_sc, acc_sc, out_acc,
                             *, hd_p, t_actual, t_kv, exp_dtype):
    h = pl.program_id(2)
    ki = pl.program_id(3)

    @pl.when(ki == 0)
    def _():
        m_sc[...] = jnp.full_like(m_sc, -jnp.inf)
        l_sc[...] = jnp.zeros_like(l_sc)
        acc_sc[...] = jnp.zeros_like(acc_sc)

    q = q_ref[0, 0, 0]                        # (t_q, hd_p) bf16, scale pre-folded
    k = k_ref[0, 0, 0]                        # (t_kv, hd_p) bf16
    v = v_ref[0, 0, 0]

    s = lax.dot_general(q, k, (((1,), (1,)), ((), ())),
                        preferred_element_type=jnp.float32)          # (t_q, t_kv)
    if t_actual % t_kv != 0:                  # only the padded case needs masking
        col = ki * t_kv + lax.broadcasted_iota(jnp.int32, (1, t_kv), 1)
        s = jnp.where(col < t_actual, s, jnp.float32(-1e30))

    m_prev = m_sc[...]
    m_new = jnp.maximum(m_prev, jnp.max(s, axis=-1, keepdims=True))
    alpha = jnp.exp(m_prev - m_new)
    p = jnp.exp((s - m_new).astype(exp_dtype))
    l_sc[...] = alpha * l_sc[...] + jnp.sum(p.astype(jnp.float32), axis=-1,
                                            keepdims=True)
    acc_sc[...] = alpha * acc_sc[...] + jnp.dot(p.astype(jnp.bfloat16), v,
                                                preferred_element_type=jnp.float32)
    m_sc[...] = m_new

    @pl.when(ki == pl.num_programs(3) - 1)
    def _():
        inv_l = pl.reciprocal(l_sc[...], approx=True)
        wav = (acc_sc[...] * inv_l).astype(jnp.bfloat16)             # (t_q, hd_p)
        off = pl.multiple_of(h * hd_p, hd_p)
        contrib = jnp.dot(wav, wp_ref[pl.ds(off, hd_p), :],
                          preferred_element_type=jnp.float32)        # (t_q, Dp)

        @pl.when(h == 0)
        def _():
            out_acc[...] = jnp.zeros_like(out_acc)

        out_acc[...] += contrib

        @pl.when(h == pl.num_programs(2) - 1)
        def _():
            o_ref[0] = (out_acc[...] + bp_ref[...]).astype(o_ref.dtype)


# ---------------------------------------------------------------------------
# Wrapper
# ---------------------------------------------------------------------------
def attention_forward(x, params, *, n_heads):
    B, T, D = x.shape
    assert D % n_heads == 0
    head_dim = D // n_heads
    scale = head_dim ** (-0.5)

    Dp = _round_up(D, 128)
    hd_p = _round_up(head_dim, 128)           # per-head 128-lane padding
    C3 = 3 * n_heads * hd_p

    # ---- tile sizes --------------------------------------------------------
    T16 = _round_up(T, 16)                    # bf16 packs 16 sublanes per vreg
    if T16 <= 512:                            # whole (padded) sequence: one kv tile
        t_q = min(256, T16)
        t_kv = _round_up(T, t_q)
        streaming = False
    else:
        t_q, t_kv = 256, 512
        streaming = True
    Tkv_pad = _round_up(T, t_kv)
    Tq_pad = _round_up(T, t_q)                # <= Tkv_pad since t_q | t_kv
    num_q = Tq_pad // t_q
    num_kv = Tkv_pad // t_kv
    # NOTE: Tkv_pad = round_up(T, t_kv) guarantees every kv tile contains at
    # least one valid (unmasked) position, so exp() never sees an all-masked row.

    def _k1_bytes(tr):
        return (Dp * C3 * 2 + C3 * 4                    # resident fused weight + bias
                + 2 * tr * Dp * 2 + 2 * tr * C3 * 2)    # double-buffered x / qkv tiles

    t_r = min(512, Tkv_pad)                   # kernel-1 row tile
    while t_r > 64 and Tkv_pad % (t_r // 2) == 0 and _k1_bytes(t_r) > (44 << 20):
        t_r //= 2
    num_r = Tkv_pad // t_r

    exp_dtype = jnp.bfloat16 if _bf16_exp_ok() else jnp.float32

    f32 = jnp.float32
    qkv_w = params['qkv_w'].astype(f32)       # (3D, D)
    qkv_b = params['qkv_b'].astype(f32)       # (3D,)
    proj_w = params['proj_w'].astype(f32)     # (D, D)
    proj_b = params['proj_b'].astype(f32)     # (D,)

    # ---- offline weight fusion (in f32, single cast to bf16) ---------------
    # x -> proj -> qkv  ==  x @ (qkv_w @ proj_w)^T + (qkv_w @ proj_b + qkv_b)
    w1 = (qkv_w @ proj_w).reshape(3, n_heads, head_dim, D)
    b1 = (qkv_w @ proj_b + qkv_b).reshape(3, n_heads, head_dim)
    w1 = w1.at[0].multiply(scale)             # fold softmax scale into q section
    b1 = b1.at[0].multiply(scale)

    wf = jnp.zeros((3, n_heads, hd_p, Dp), f32).at[:, :, :head_dim, :D].set(w1)
    wf = wf.transpose(3, 0, 1, 2).reshape(Dp, C3).astype(jnp.bfloat16)
    bf = jnp.zeros((3, n_heads, hd_p), f32).at[:, :, :head_dim].set(b1)
    bf = bf.reshape(1, C3)

    # output projection, head-major rows, padded: (H*hd_p, Dp) bf16
    wp = jnp.zeros((n_heads, hd_p, Dp), f32).at[:, :head_dim, :D].set(
        proj_w.T.reshape(n_heads, head_dim, D))
    wp = wp.reshape(n_heads * hd_p, Dp).astype(jnp.bfloat16)
    bp = jnp.zeros((1, Dp), f32).at[0, :D].set(proj_b)

    x_p = jnp.zeros((B, Tkv_pad, Dp), jnp.bfloat16).at[:, :T, :D].set(
        x.astype(jnp.bfloat16))

    vmem_full = pl.BlockSpec(memory_space=pltpu.MemorySpace.VMEM)

    def _limit(nbytes):                       # computed VMEM limit with headroom
        return int(min(max(nbytes * 5 // 4 + (4 << 20), 24 << 20), 60 << 20))

    # ---- kernel 1: fused (proj -> qkv) projection, head-major output -------
    qkv = pl.pallas_call(
        functools.partial(_fused_qkv_kernel, n_heads=n_heads, hd_p=hd_p),
        out_shape=jax.ShapeDtypeStruct((B, 3, n_heads, Tkv_pad, hd_p), jnp.bfloat16),
        grid_spec=pltpu.PrefetchScalarGridSpec(
            num_scalar_prefetch=0,
            grid=(B, num_r),
            in_specs=[
                pl.BlockSpec((1, t_r, Dp), lambda b, r: (b, r, 0)),  # x tile
                vmem_full,        # fused weight (resident once)
                vmem_full,        # fused bias
            ],
            out_specs=pl.BlockSpec((1, 3, n_heads, t_r, hd_p),
                                   lambda b, r: (b, 0, 0, r, 0)),
        ),
        compiler_params=pltpu.CompilerParams(
            dimension_semantics=("parallel", "parallel"),
            vmem_limit_bytes=_limit(_k1_bytes(t_r))),
    )(x_p, wf, bf)

    # ---- kernel 2: attention (heads on the grid) + fused output proj -------
    k2_bytes = (n_heads * hd_p * Dp * 2 + Dp * 4          # resident proj weight/bias
                + 2 * t_q * hd_p * 2 + 4 * t_kv * hd_p * 2
                + 2 * t_q * Dp * 2                        # double-buffered q/k/v/out
                + t_q * Dp * 4 + t_q * (hd_p + 2) * 4     # scratch
                + 4 * t_q * t_kv * 4)                     # headroom for s/p spills

    if not streaming:
        kernel = functools.partial(_attn_proj_single_kernel,
                                   hd_p=hd_p, t_actual=T, exp_dtype=exp_dtype)
        grid = (B, num_q, n_heads)
        q_map = lambda b, qi, h: (b, 0, h, qi, 0)
        k_map = lambda b, qi, h: (b, 1, h, 0, 0)
        v_map = lambda b, qi, h: (b, 2, h, 0, 0)
        o_map = lambda b, qi, h: (b, qi, 0)
        scratch = [pltpu.VMEM((t_q, Dp), jnp.float32)]            # merged proj acc
        dims = ("parallel", "parallel", "arbitrary")
    else:
        kernel = functools.partial(_attn_proj_stream_kernel,
                                   hd_p=hd_p, t_actual=T, t_kv=t_kv,
                                   exp_dtype=exp_dtype)
        grid = (B, num_q, n_heads, num_kv)
        q_map = lambda b, qi, h, ki: (b, 0, h, qi, 0)
        k_map = lambda b, qi, h, ki: (b, 1, h, ki, 0)
        v_map = lambda b, qi, h, ki: (b, 2, h, ki, 0)
        o_map = lambda b, qi, h, ki: (b, qi, 0)
        scratch = [pltpu.VMEM((t_q, 1), jnp.float32),             # running max
                   pltpu.VMEM((t_q, 1), jnp.float32),             # running sum
                   pltpu.VMEM((t_q, hd_p), jnp.float32),          # per-head acc
                   pltpu.VMEM((t_q, Dp), jnp.float32)]            # merged proj acc
        dims = ("parallel", "parallel", "arbitrary", "arbitrary")

    out_p = pl.pallas_call(
        kernel,
        out_shape=jax.ShapeDtypeStruct((B, Tq_pad, Dp), x.dtype),
        grid_spec=pltpu.PrefetchScalarGridSpec(
            num_scalar_prefetch=0,
            grid=grid,
            in_specs=[
                pl.BlockSpec((1, 1, 1, t_q, hd_p), q_map),        # q head tile
                pl.BlockSpec((1, 1, 1, t_kv, hd_p), k_map),       # k head tile
                pl.BlockSpec((1, 1, 1, t_kv, hd_p), v_map),       # v head tile
                vmem_full,    # per-head proj weight (resident, sliced by pl.ds)
                vmem_full,    # proj bias
            ],
            out_specs=pl.BlockSpec((1, t_q, Dp), o_map),
            scratch_shapes=scratch,
        ),
        compiler_params=pltpu.CompilerParams(
            dimension_semantics=dims,
            vmem_limit_bytes=_limit(k2_bytes)),
    )(qkv, qkv, qkv, wp, bp)

    return out_p[:, :T, :D]


def attention_reference(x, params, *, n_heads):
    """Pure-JAX f32 reference mirroring the PyTorch forward."""
    B, T, D = x.shape
    head_dim = D // n_heads
    scale = head_dim ** (-0.5)
    xp = x @ params['proj_w'].T + params['proj_b']
    qkv = xp @ params['qkv_w'].T + params['qkv_b']                  # (B, T, 3D)
    qkv = qkv.reshape(B, T, 3, n_heads, head_dim).transpose(2, 0, 3, 1, 4)
    q, k, v = qkv[0], qkv[1], qkv[2]                                # (B, H, T, hd)
    dp = jnp.einsum('bhqd,bhkd->bhqk', q, k) * scale
    attn = jax.nn.softmax(dp, axis=-1)
    wav = jnp.einsum('bhqk,bhkd->bhqd', attn, v)                    # (B, H, T, hd)
    merged = wav.transpose(0, 2, 1, 3).reshape(B, T, D)
    return merged @ params['proj_w'].T + params['proj_b']


if __name__ == "__main__":
    B, T, DIM, N_HEADS = 2, 8, 32, 4

    key = jax.random.PRNGKey(0)
    kx, kqw, kqb, kpw, kpb = jax.random.split(key, 5)

    x = jax.random.normal(kx, (B, T, DIM), dtype=jnp.float32)
    params = {
        'qkv_w': jax.random.normal(kqw, (3 * DIM, DIM), dtype=jnp.float32) * 0.05,
        'qkv_b': jax.random.normal(kqb, (3 * DIM,), dtype=jnp.float32) * 0.05,
        'proj_w': jax.random.normal(kpw, (DIM, DIM), dtype=jnp.float32) * 0.05,
        'proj_b': jax.random.normal(kpb, (DIM,), dtype=jnp.float32) * 0.05,
    }

    out = attention_forward(x, params, n_heads=N_HEADS)
    out = jax.block_until_ready(out)

    ref = attention_reference(x, params, n_heads=N_HEADS)
    assert out.shape == (B, T, DIM)
    max_err = jnp.max(jnp.abs(out - ref))
    # bf16 matmuls (f32 accumulation) + approx reciprocal loosen the tolerance vs the f32 ref.
    assert jnp.allclose(out, ref, atol=2e-2, rtol=2e-2), f"mismatch vs reference (max abs err {max_err})"

    print("KERNEL_OK")
</pallas_src>

<mosaic_0001>
module attributes {stable_mosaic.version = 11 : i64} {
  func.func @_fused_qkv_kernel(%arg0: i32, %arg1: i32, %arg2: memref<1x16x128xbf16, #tpu.memory_space<vmem>>, %arg3: memref<128x1536xbf16, #tpu.memory_space<vmem>>, %arg4: memref<1x1536xf32, #tpu.memory_space<vmem>>, %arg5: memref<1x3x4x16x128xbf16, #tpu.memory_space<vmem>>) attributes {dimension_semantics = [#tpu.dimension_semantics<parallel>, #tpu.dimension_semantics<parallel>], iteration_bounds = array<i64: 2, 1>, scalar_prefetch = 0 : i64, scratch_operands = 0 : i64, tpu.core_type = #tpu.core_type<tc>, window_params = [{transform_indices = @transform_0, window_bounds = array<i64: 1, 16, 128>}, {pipeline_mode = #tpu.pipeline_mode<synchronous>, transform_indices = @transform_1, window_bounds = array<i64: 128, 1536>}, {pipeline_mode = #tpu.pipeline_mode<synchronous>, transform_indices = @transform_2, window_bounds = array<i64: 1, 1536>}, {transform_indices = @transform_3, window_bounds = array<i64: 1, 3, 4, 16, 128>}]} {
    %c0 = arith.constant 0 : index
    %c0_0 = arith.constant 0 : index
    %c0_1 = arith.constant 0 : index
    %0 = vector.load %arg2[%c0, %c0_0, %c0_1] : memref<1x16x128xbf16, #tpu.memory_space<vmem>>, vector<1x16x128xbf16>
    %1 = vector.shape_cast %0 : vector<1x16x128xbf16> to vector<16x128xbf16>
    %c0_2 = arith.constant 0 : index
    %c0_3 = arith.constant 0 : index
    %2 = vector.load %arg3[%c0_2, %c0_3] : memref<128x1536xbf16, #tpu.memory_space<vmem>>, vector<128x1536xbf16>
    %cst = arith.constant dense<0.000000e+00> : vector<16x1536xf32>
    %3 = tpu.matmul %1, %2, %cst {dimension_numbers = #tpu.dot_dimension_numbers<[1], [0], [0], [1], [0, 0, 1, 1], [], []>} : vector<16x128xbf16>, vector<128x1536xbf16>, vector<16x1536xf32> -> vector<16x1536xf32>
    %c0_4 = arith.constant 0 : index
    %c0_5 = arith.constant 0 : index
    %4 = vector.load %arg4[%c0_4, %c0_5] : memref<1x1536xf32, #tpu.memory_space<vmem>>, vector<1x1536xf32>
    %5 = vector.broadcast %4 : vector<1x1536xf32> to vector<16x1536xf32>
    %6 = arith.addf %3, %5 : vector<16x1536xf32>
    %7 = arith.truncf %6 : vector<16x1536xf32> to vector<16x1536xbf16>
    %8 = vector.extract_strided_slice %7 {offsets = [0, 0], sizes = [16, 128], strides = [1, 1]} : vector<16x1536xbf16> to vector<16x128xbf16>
    %c0_6 = arith.constant 0 : index
    %c0_7 = arith.constant 0 : index
    %c0_8 = arith.constant 0 : index
    %c0_9 = arith.constant 0 : index
    %c0_10 = arith.constant 0 : index
    %9 = vector.load %arg5[%c0_6, %c0_7, %c0_8, %c0_9, %c0_10] : memref<1x3x4x16x128xbf16, #tpu.memory_space<vmem>>, vector<1x1x1x16x128xbf16>
    %10 = vector.shape_cast %9 : vector<1x1x1x16x128xbf16> to vector<16x128xbf16>
    %11 = vector.shape_cast %8 : vector<16x128xbf16> to vector<1x1x1x16x128xbf16>
    tpu.vector_store %arg5[%c0_6, %c0_7, %c0_8, %c0_9, %c0_10], %11 {strides = array<i32>} : memref<1x3x4x16x128xbf16, #tpu.memory_space<vmem>>, vector<1x1x1x16x128xbf16>,
    %12 = vector.extract_strided_slice %7 {offsets = [0, 128], sizes = [16, 128], strides = [1, 1]} : vector<16x1536xbf16> to vector<16x128xbf16>
    %c0_11 = arith.constant 0 : index
    %c0_12 = arith.constant 0 : index
    %c1 = arith.constant 1 : index
    %c0_13 = arith.constant 0 : index
    %c0_14 = arith.constant 0 : index
    %13 = vector.load %arg5[%c0_11, %c0_12, %c1, %c0_13, %c0_14] : memref<1x3x4x16x128xbf16, #tpu.memory_space<vmem>>, vector<1x1x1x16x128xbf16>
    %14 = vector.shape_cast %13 : vector<1x1x1x16x128xbf16> to vector<16x128xbf16>
    %15 = vector.shape_cast %12 : vector<16x128xbf16> to vector<1x1x1x16x128xbf16>
    tpu.vector_store %arg5[%c0_11, %c0_12, %c1, %c0_13, %c0_14], %15 {strides = array<i32>} : memref<1x3x4x16x128xbf16, #tpu.memory_space<vmem>>, vector<1x1x1x16x128xbf16>,
    %16 = vector.extract_strided_slice %7 {offsets = [0, 256], sizes = [16, 128], strides = [1, 1]} : vector<16x1536xbf16> to vector<16x128xbf16>
    %c0_15 = arith.constant 0 : index
    %c0_16 = arith.constant 0 : index
    %c2 = arith.constant 2 : index
    %c0_17 = arith.constant 0 : index
    %c0_18 = arith.constant 0 : index
    %17 = vector.load %arg5[%c0_15, %c0_16, %c2, %c0_17, %c0_18] : memref<1x3x4x16x128xbf16, #tpu.memory_space<vmem>>, vector<1x1x1x16x128xbf16>
    %18 = vector.shape_cast %17 : vector<1x1x1x16x128xbf16> to vector<16x128xbf16>
    %19 = vector.shape_cast %16 : vector<16x128xbf16> to vector<1x1x1x16x128xbf16>
    tpu.vector_store %arg5[%c0_15, %c0_16, %c2, %c0_17, %c0_18], %19 {strides = array<i32>} : memref<1x3x4x16x128xbf16, #tpu.memory_space<vmem>>, vector<1x1x1x16x128xbf16>,
    %20 = vector.extract_strided_slice %7 {offsets = [0, 384], sizes = [16, 128], strides = [1, 1]} : vector<16x1536xbf16> to vector<16x128xbf16>
    %c0_19 = arith.constant 0 : index
    %c0_20 = arith.constant 0 : index
    %c3 = arith.constant 3 : index
    %c0_21 = arith.constant 0 : index
    %c0_22 = arith.constant 0 : index
    %21 = vector.load %arg5[%c0_19, %c0_20, %c3, %c0_21, %c0_22] : memref<1x3x4x16x128xbf16, #tpu.memory_space<vmem>>, vector<1x1x1x16x128xbf16>
    %22 = vector.shape_cast %21 : vector<1x1x1x16x128xbf16> to vector<16x128xbf16>
    %23 = vector.shape_cast %20 : vector<16x128xbf16> to vector<1x1x1x16x128xbf16>
    tpu.vector_store %arg5[%c0_19, %c0_20, %c3, %c0_21, %c0_22], %23 {strides = array<i32>} : memref<1x3x4x16x128xbf16, #tpu.memory_space<vmem>>, vector<1x1x1x16x128xbf16>,
    %24 = vector.extract_strided_slice %7 {offsets = [0, 512], sizes = [16, 128], strides = [1, 1]} : vector<16x1536xbf16> to vector<16x128xbf16>
    %c0_23 = arith.constant 0 : index
    %c1_24 = arith.constant 1 : index
    %c0_25 = arith.constant 0 : index
    %c0_26 = arith.constant 0 : index
    %c0_27 = arith.constant 0 : index
    %25 = vector.load %arg5[%c0_23, %c1_24, %c0_25, %c0_26, %c0_27] : memref<1x3x4x16x128xbf16, #tpu.memory_space<vmem>>, vector<1x1x1x16x128xbf16>
    %26 = vector.shape_cast %25 : vector<1x1x1x16x128xbf16> to vector<16x128xbf16>
    %27 = vector.shape_cast %24 : vector<16x128xbf16> to vector<1x1x1x16x128xbf16>
    tpu.vector_store %arg5[%c0_23, %c1_24, %c0_25, %c0_26, %c0_27], %27 {strides = array<i32>} : memref<1x3x4x16x128xbf16, #tpu.memory_space<vmem>>, vector<1x1x1x16x128xbf16>,
    %28 = vector.extract_strided_slice %7 {offsets = [0, 640], sizes = [16, 128], strides = [1, 1]} : vector<16x1536xbf16> to vector<16x128xbf16>
    %c0_28 = arith.constant 0 : index
    %c1_29 = arith.constant 1 : index
    %c1_30 = arith.constant 1 : index
    %c0_31 = arith.constant 0 : index
    %c0_32 = arith.constant 0 : index
    %29 = vector.load %arg5[%c0_28, %c1_29, %c1_30, %c0_31, %c0_32] : memref<1x3x4x16x128xbf16, #tpu.memory_space<vmem>>, vector<1x1x1x16x128xbf16>
    %30 = vector.shape_cast %29 : vector<1x1x1x16x128xbf16> to vector<16x128xbf16>
    %31 = vector.shape_cast %28 : vector<16x128xbf16> to vector<1x1x1x16x128xbf16>
    tpu.vector_store %arg5[%c0_28, %c1_29, %c1_30, %c0_31, %c0_32], %31 {strides = array<i32>} : memref<1x3x4x16x128xbf16, #tpu.memory_space<vmem>>, vector<1x1x1x16x128xbf16>,
    %32 = vector.extract_strided_slice %7 {offsets = [0, 768], sizes = [16, 128], strides = [1, 1]} : vector<16x1536xbf16> to vector<16x128xbf16>
    %c0_33 = arith.constant 0 : index
    %c1_34 = arith.constant 1 : index
    %c2_35 = arith.constant 2 : index
    %c0_36 = arith.constant 0 : index
    %c0_37 = arith.constant 0 : index
    %33 = vector.load %arg5[%c0_33, %c1_34, %c2_35, %c0_36, %c0_37] : memref<1x3x4x16x128xbf16, #tpu.memory_space<vmem>>, vector<1x1x1x16x128xbf16>
    %34 = vector.shape_cast %33 : vector<1x1x1x16x128xbf16> to vector<16x128xbf16>
    %35 = vector.shape_cast %32 : vector<16x128xbf16> to vector<1x1x1x16x128xbf16>
    tpu.vector_store %arg5[%c0_33, %c1_34, %c2_35, %c0_36, %c0_37], %35 {strides = array<i32>} : memref<1x3x4x16x128xbf16, #tpu.memory_space<vmem>>, vector<1x1x1x16x128xbf16>,
    %36 = vector.extract_strided_slice %7 {offsets = [0, 896], sizes = [16, 128], strides = [1, 1]} : vector<16x1536xbf16> to vector<16x128xbf16>
    %c0_38 = arith.constant 0 : index
    %c1_39 = arith.constant 1 : index
    %c3_40 = arith.constant 3 : index
    %c0_41 = arith.constant 0 : index
    %c0_42 = arith.constant 0 : index
    %37 = vector.load %arg5[%c0_38, %c1_39, %c3_40, %c0_41, %c0_42] : memref<1x3x4x16x128xbf16, #tpu.memory_space<vmem>>, vector<1x1x1x16x128xbf16>
    %38 = vector.shape_cast %37 : vector<1x1x1x16x128xbf16> to vector<16x128xbf16>
    %39 = vector.shape_cast %36 : vector<16x128xbf16> to vector<1x1x1x16x128xbf16>
    tpu.vector_store %arg5[%c0_38, %c1_39, %c3_40, %c0_41, %c0_42], %39 {strides = array<i32>} : memref<1x3x4x16x128xbf16, #tpu.memory_space<vmem>>, vector<1x1x1x16x128xbf16>,
    %40 = vector.extract_strided_slice %7 {offsets = [0, 1024], sizes = [16, 128], strides = [1, 1]} : vector<16x1536xbf16> to vector<16x128xbf16>
    %c0_43 = arith.constant 0 : index
    %c2_44 = arith.constant 2 : index
    %c0_45 = arith.constant 0 : index
    %c0_46 = arith.constant 0 : index
    %c0_47 = arith.constant 0 : index
    %41 = vector.load %arg5[%c0_43, %c2_44, %c0_45, %c0_46, %c0_47] : memref<1x3x4x16x128xbf16, #tpu.memory_space<vmem>>, vector<1x1x1x16x128xbf16>
    %42 = vector.shape_cast %41 : vector<1x1x1x16x128xbf16> to vector<16x128xbf16>
    %43 = vector.shape_cast %40 : vector<16x128xbf16> to vector<1x1x1x16x128xbf16>
    tpu.vector_store %arg5[%c0_43, %c2_44, %c0_45, %c0_46, %c0_47], %43 {strides = array<i32>} : memref<1x3x4x16x128xbf16, #tpu.memory_space<vmem>>, vector<1x1x1x16x128xbf16>,
    %44 = vector.extract_strided_slice %7 {offsets = [0, 1152], sizes = [16, 128], strides = [1, 1]} : vector<16x1536xbf16> to vector<16x128xbf16>
    %c0_48 = arith.constant 0 : index
    %c2_49 = arith.constant 2 : index
    %c1_50 = arith.constant 1 : index
    %c0_51 = arith.constant 0 : index
    %c0_52 = arith.constant 0 : index
    %45 = vector.load %arg5[%c0_48, %c2_49, %c1_50, %c0_51, %c0_52] : memref<1x3x4x16x128xbf16, #tpu.memory_space<vmem>>, vector<1x1x1x16x128xbf16>
    %46 = vector.shape_cast %45 : vector<1x1x1x16x128xbf16> to vector<16x128xbf16>
    %47 = vector.shape_cast %44 : vector<16x128xbf16> to vector<1x1x1x16x128xbf16>
    tpu.vector_store %arg5[%c0_48, %c2_49, %c1_50, %c0_51, %c0_52], %47 {strides = array<i32>} : memref<1x3x4x16x128xbf16, #tpu.memory_space<vmem>>, vector<1x1x1x16x128xbf16>,
    %48 = vector.extract_strided_slice %7 {offsets = [0, 1280], sizes = [16, 128], strides = [1, 1]} : vector<16x1536xbf16> to vector<16x128xbf16>
    %c0_53 = arith.constant 0 : index
    %c2_54 = arith.constant 2 : index
    %c2_55 = arith.constant 2 : index
    %c0_56 = arith.constant 0 : index
    %c0_57 = arith.constant 0 : index
    %49 = vector.load %arg5[%c0_53, %c2_54, %c2_55, %c0_56, %c0_57] : memref<1x3x4x16x128xbf16, #tpu.memory_space<vmem>>, vector<1x1x1x16x128xbf16>
    %50 = vector.shape_cast %49 : vector<1x1x1x16x128xbf16> to vector<16x128xbf16>
    %51 = vector.shape_cast %48 : vector<16x128xbf16> to vector<1x1x1x16x128xbf16>
    tpu.vector_store %arg5[%c0_53, %c2_54, %c2_55, %c0_56, %c0_57], %51 {strides = array<i32>} : memref<1x3x4x16x128xbf16, #tpu.memory_space<vmem>>, vector<1x1x1x16x128xbf16>,
    %52 = vector.extract_strided_slice %7 {offsets = [0, 1408], sizes = [16, 128], strides = [1, 1]} : vector<16x1536xbf16> to vector<16x128xbf16>
    %c0_58 = arith.constant 0 : index
    %c2_59 = arith.constant 2 : index
    %c3_60 = arith.constant 3 : index
    %c0_61 = arith.constant 0 : index
    %c0_62 = arith.constant 0 : index
    %53 = vector.load %arg5[%c0_58, %c2_59, %c3_60, %c0_61, %c0_62] : memref<1x3x4x16x128xbf16, #tpu.memory_space<vmem>>, vector<1x1x1x16x128xbf16>
    %54 = vector.shape_cast %53 : vector<1x1x1x16x128xbf16> to vector<16x128xbf16>
    %55 = vector.shape_cast %52 : vector<16x128xbf16> to vector<1x1x1x16x128xbf16>
    tpu.vector_store %arg5[%c0_58, %c2_59, %c3_60, %c0_61, %c0_62], %55 {strides = array<i32>} : memref<1x3x4x16x128xbf16, #tpu.memory_space<vmem>>, vector<1x1x1x16x128xbf16>,
    return
  }
  func.func @transform_0(%arg0: i32, %arg1: i32) -> (i32, i32, i32) {
    %c0_i32 = arith.constant 0 : i32
    %c0_i32_0 = arith.constant 0 : i32
    return %arg0, %arg1, %c0_i32 : i32, i32, i32
  }
  func.func @transform_1(%arg0: i32, %arg1: i32) -> (i32, i32) {
    %c0_i32 = arith.constant 0 : i32
    %c0_i32_0 = arith.constant 0 : i32
    %c0_i32_1 = arith.constant 0 : i32
    return %c0_i32, %c0_i32_0 : i32, i32
  }
  func.func @transform_2(%arg0: i32, %arg1: i32) -> (i32, i32) {
    %c0_i32 = arith.constant 0 : i32
    %c0_i32_0 = arith.constant 0 : i32
    %c0_i32_1 = arith.constant 0 : i32
    return %c0_i32, %c0_i32_0 : i32, i32
  }
  func.func @transform_3(%arg0: i32, %arg1: i32) -> (i32, i32, i32, i32, i32) {
    %c0_i32 = arith.constant 0 : i32
    %c0_i32_0 = arith.constant 0 : i32
    %c0_i32_1 = arith.constant 0 : i32
    %c0_i32_2 = arith.constant 0 : i32
    return %arg0, %c0_i32, %c0_i32_0, %arg1, %c0_i32_1 : i32, i32, i32, i32, i32
  }
}

</mosaic_0001>

<llo_original>
// kernel: tpu_custom_call.1
$region0: #{tpu_custom_call.1}
  #allocation0 [shape = 'u32[]', space=smem, size = 0x4, offset = 0x4, fixed_abs, tag = 'smem constant byte address 0x4 - core index']
  #allocation1 [shape = 'u32[144,128]{1,0:T(1,128)}', space=vmem, size = 0x12000, scoped, tag = 'internal scratch']
  %s0 = inlined_call_operand.hbm [shape: bf16[2,16,128], index: 0, kind: input, shape index: {}]
  %s1 = inlined_call_operand.hbm [shape: bf16[128,1536], index: 1, kind: input, shape index: {}]
  %s2 = inlined_call_operand.hbm [shape: f32[1,1536], index: 2, kind: input, shape index: {}]
  %s3 = inlined_call_operand.hbm [shape: bf16[2,3,4,16,128], index: 3, kind: output, shape index: {}]
  %s4 = sld [smem:[#allocation0]]
  $region57: #{tpu_custom_call.1} parent=0
    _
  %s6 = ssub.s32 1, %s4
  %s7 = scalar_select 0, %s6, %s4
  $region1: #{tpu_custom_call.1} parent=0
    #allocation2 [shape = 'u8[8192]{0}', space=vmem, size = 0x2000, scoped, tag = 'input window, operand 0']
    #allocation3 [shape = 's32[2]{0}', space=sflag, size = 0x8, scoped, tag = 'scoped memory for tpu_custom_call.1']
    #allocation4 [shape = 's32[2]{0}', space=sflag, size = 0x8, scoped, tag = 'scoped memory for tpu_custom_call.1']
    #allocation5 [shape = 'u8[393216]{0}', space=vmem, size = 0x60000, scoped, tag = 'input window, operand 1, single buffered']
    #allocation6 [shape = 's32[1]{0}', space=sflag, size = 0x4, scoped, tag = 'scoped memory for tpu_custom_call.1']
    #allocation7 [shape = 'u8[6144]{0}', space=vmem, size = 0x1800, scoped, tag = 'input window, operand 2, single buffered']
    #allocation8 [shape = 'u8[98304]{0}', space=vmem, size = 0x18000, scoped, tag = 'output window, operand 0']
    %8 = vsyncpa [#allocation3], 0
    %s9 = scalar_lea.sflag [#allocation3], 1
    %10 = vsyncpa %s9, 0
    %11 = vsyncpa [#allocation6], 0
    %12 = vsyncpa [#allocation4], 0
    %s13 = scalar_lea.sflag [#allocation4], 1
    %14 = vsyncpa %s13, 0
    loop: start=0, step=1, limit=4
    $region2: #{tpu_custom_call.1} parent=1 // loop_pre_header
      _
    $region3: #{tpu_custom_call.1} parent=1 // loop_header
      %s16 = sphi 0, %s20
      %p17 = scmp.ge.s32.totalorder %s16, 4
      %s23 = sphi 0, %s35
      %s24 = sphi 0, %s31
      %s25 = sphi 0, %s23
      %s26 = sphi 0, %s24
      %s27 = sphi 0, %s25
      %s28 = sphi 0, %s26
      %s40 = sphi 0, %s42
      %s43 = sphi 0, %s40
      %s44 = sphi 0, %s43
      %s60 = sphi 0, %s44
      %s64 = sphi 0, %s64
      %s66 = sphi 0, %s64
      %s67 = sphi 0, %s66
      %s81 = sphi 0, %s67
      %s85 = sphi 0, %s85
      %s87 = sphi 0, %s85
      %s88 = sphi 0, %s87
      %s102 = sphi 0, %s88
      %s110 = sphi 0, %s112
      %s113 = sphi 0, %s110
      %s114 = sphi 0, %s113
      %s130 = sphi 0, %s114
    $region4: #{tpu_custom_call.1} parent=1 // loop_header_branch
      %19 = sbr.rel (%p17) target = $region8
    $region5: #{tpu_custom_call.1} parent=1 // loop_body
      %s21 = ssub.s32 %s16, 1
      %s22 = ssub.s32 %s16, 2
      %s29 = sadd.s32 1, %s24
      %p30 = scmp.ge.s32.totalorder %s29, 1
      %s31 = scalar_select %p30, 0, %s29
      %s32 = sadd.s32 1, %s23
      %s33 = scalar_select %p30, %s32, %s23
      %p34 = scmp.ge.s32.totalorder %s33, 2
      %s35 = scalar_select %p34, 0, %s33
      %s36 = ssub.s32 %s23, %s35
      %s37 = ssub.s32 %s24, %s31
      %s38 = sor.u32 %s36, %s37
      %p39 = scmp.eq.s32.totalorder %s38, 0
      %s41 = sadd.s32 %s40, 1
      %s42 = scalar_select %p39, %s40, %s41
      %p45 = pneg %p39
      %p46 = scmp.eq.s32.totalorder %s16, 1
      %p47 = por %p45, %p46
      %p48 = scmp.ne.s32.totalorder %s40, %s43
      %p49 = scmp.eq.s32.totalorder %s16, 0
      %p50 = por %p48, %p49
      %p51 = scmp.ne.s32.totalorder %s40, %s43
      %p52 = scmp.eq.s32.totalorder %s21, 1
      %p53 = por %p51, %p52
      %p54 = scmp.ne.s32.totalorder %s43, %s44
      %p55 = scmp.eq.s32.totalorder %s21, 0
      %p56 = por %p54, %p55
      %p57 = scmp.ne.s32.totalorder %s43, %s44
      %p58 = scmp.eq.s32.totalorder %s22, 1
      %p59 = por %p57, %p58
      %p61 = scmp.ne.s32.totalorder %s44, %s60
      %p62 = scmp.eq.s32.totalorder %s22, 0
      %p63 = por %p61, %p62
      %s65 = sadd.s32 %s64, 1
      %p68 = scmp.eq.s32.totalorder %s16, 1
      %p69 = scmp.ne.s32.totalorder %s64, %s66
      %p70 = scmp.eq.s32.totalorder %s16, 0
      %p71 = por %p69, %p70
      %p72 = scmp.ne.s32.totalorder %s64, %s66
      %p73 = scmp.eq.s32.totalorder %s21, 1
      %p74 = por %p72, %p73
      %p75 = scmp.ne.s32.totalorder %s66, %s67
      %p76 = scmp.eq.s32.totalorder %s21, 0
      %p77 = por %p75, %p76
      %p78 = scmp.ne.s32.totalorder %s66, %s67
      %p79 = scmp.eq.s32.totalorder %s22, 1
      %p80 = por %p78, %p79
      %p82 = scmp.ne.s32.totalorder %s67, %s81
      %p83 = scmp.eq.s32.totalorder %s22, 0
      %p84 = por %p82, %p83
      %s86 = sadd.s32 %s85, 1
      %p89 = scmp.eq.s32.totalorder %s16, 1
      %p90 = scmp.ne.s32.totalorder %s85, %s87
      %p91 = scmp.eq.s32.totalorder %s16, 0
      %p92 = por %p90, %p91
      %p93 = scmp.ne.s32.totalorder %s85, %s87
      %p94 = scmp.eq.s32.totalorder %s21, 1
      %p95 = por %p93, %p94
      %p96 = scmp.ne.s32.totalorder %s87, %s88
      %p97 = scmp.eq.s32.totalorder %s21, 0
      %p98 = por %p96, %p97
      %p99 = scmp.ne.s32.totalorder %s87, %s88
      %p100 = scmp.eq.s32.totalorder %s22, 1
      %p101 = por %p99, %p100
      %p103 = scmp.ne.s32.totalorder %s88, %s102
      %p104 = scmp.eq.s32.totalorder %s22, 0
      %p105 = por %p103, %p104
      %s106 = ssub.s32 %s23, %s35
      %s107 = ssub.s32 %s24, %s31
      %s108 = sor.u32 %s106, %s107
      %p109 = scmp.eq.s32.totalorder %s108, 0
      %s111 = sadd.s32 %s110, 1
      %s112 = scalar_select %p109, %s110, %s111
      %p115 = pneg %p109
      %p116 = scmp.eq.s32.totalorder %s16, 1
      %p117 = por %p115, %p116
      %p118 = scmp.ne.s32.totalorder %s110, %s113
      %p119 = scmp.eq.s32.totalorder %s16, 0
      %p120 = por %p118, %p119
      %p121 = scmp.ne.s32.totalorder %s110, %s113
      %p122 = scmp.eq.s32.totalorder %s21, 1
      %p123 = por %p121, %p122
      %p124 = scmp.ne.s32.totalorder %s113, %s114
      %p125 = scmp.eq.s32.totalorder %s21, 0
      %p126 = por %p124, %p125
      %p127 = scmp.ne.s32.totalorder %s113, %s114
      %p128 = scmp.eq.s32.totalorder %s22, 1
      %p129 = por %p127, %p128
      %p131 = scmp.ne.s32.totalorder %s114, %s130
      %p132 = scmp.eq.s32.totalorder %s22, 0
      %p133 = por %p131, %p132
      %p134 = scmp.le.s32.totalorder 1, %s16
      %p135 = scmp.lt.s32.totalorder %s16, 3
      %p136 = pnand %p134, %p135
      %p137 = pneg %p136
      // Predicated region
      $region9: #{tpu_custom_call.1} parent=5 // pred_check
        _
      $region10: #{tpu_custom_call.1} parent=5 // pred_check_branch
        %139 = sbr.rel (%p136) target = $region12
      $region11: #{tpu_custom_call.1} parent=5 // pred_region
        %s140 = ssub.s32 %s16, 1
        // Predicated region
        $region13: #{tpu_custom_call.1} parent=11 // pred_check
          %p141 = pneg %p77
        $region14: #{tpu_custom_call.1} parent=11 // pred_check_branch
          %143 = sbr.rel (%p141) target = $region16
        $region15: #{tpu_custom_call.1} parent=11 // pred_region
          %s145 = ssub.s32 12288, 12288
          %146 = vsyncadd [#allocation6], %s145
          %s147 = sshll.u32 [#allocation5], 4
          %s148 = int_to_ptr.vmem [resolvable:$true] %s147
          %153 = dma.hbm_to_vmem [thread:$0]  %s1, 12288, %s148, [#allocation6], 768, 768, 48
        $region16: #{tpu_custom_call.1} parent=11 // pred_fallthru
          _
        // Predicated region
        $region17: #{tpu_custom_call.1} parent=11 // pred_check
          %p154 = pneg %p98
        $region18: #{tpu_custom_call.1} parent=11 // pred_check_branch
          %156 = sbr.rel (%p154) target = $region20
        $region19: #{tpu_custom_call.1} parent=11 // pred_region
          %s158 = ssub.s32 192, 192
          %159 = vsyncadd [#allocation6], %s158
          %s161 = sshll.u32 [#allocation7], 4
          %s162 = int_to_ptr.vmem [resolvable:$true] %s161
          %164 = dma.hbm_to_vmem [thread:$0]  %s2, 192, %s162, [#allocation6]
        $region20: #{tpu_custom_call.1} parent=11 // pred_fallthru
          _
      $region12: #{tpu_custom_call.1} parent=5 // pred_fallthru
        _
      %p165 = scmp.lt.s32.totalorder %s16, 2
      // Predicated region
      $region21: #{tpu_custom_call.1} parent=5 // pred_check
        %p166 = pneg %p165
      $region22: #{tpu_custom_call.1} parent=5 // pred_check_branch
        %168 = sbr.rel (%p166) target = $region24
      $region23: #{tpu_custom_call.1} parent=5 // pred_region
        // Predicated region
        $region25: #{tpu_custom_call.1} parent=23 // pred_check
          %p169 = pneg %p50
        $region26: #{tpu_custom_call.1} parent=23 // pred_check_branch
          %171 = sbr.rel (%p169) target = $region28
        $region27: #{tpu_custom_call.1} parent=23 // pred_region
          %s172 = sand.u32 %s40, 1
          %s173 = scalar_lea.sflag [#allocation3], %s172
          %s174 = sand.u32 %s40, 1
          %s175 = smul.addr %s174, 8
          %s176 = scalar_lea.vmem [#allocation2], %s175
          %s177 = smul.u32 2, %s24
          %s179 = ssub.s32 128, 128
          %180 = vsyncadd %s173, %s179
          %s181 = smul.addr %s23, 2
          %s182 = sadd.s32 %s177, %s181
          %s183 = smul.addr %s182, 64
          %s184 = scalar_lea.hbm %s0, %s183
          %s185 = sshll.u32 %s176, 4
          %s186 = int_to_ptr.vmem [resolvable:$true] %s185
          %191 = dma.hbm_to_vmem [thread:$0]  %s184, 128, %s186, %s173, 64, 64, 4
        $region28: #{tpu_custom_call.1} parent=23 // pred_fallthru
          _
      $region24: #{tpu_custom_call.1} parent=5 // pred_fallthru
        _
      %p192 = scmp.le.s32.totalorder 1, %s16
      %p193 = scmp.lt.s32.totalorder %s16, 3
      %p194 = pnand %p192, %p193
      %p195 = pneg %p194
      // Predicated region
      $region29: #{tpu_custom_call.1} parent=5 // pred_check
        _
      $region30: #{tpu_custom_call.1} parent=5 // pred_check_branch
        %197 = sbr.rel (%p194) target = $region32
      $region31: #{tpu_custom_call.1} parent=5 // pred_region
        %s198 = ssub.s32 %s16, 1
        %s199 = sand.u32 %s43, 1
        %s200 = scalar_lea.sflag [#allocation3], %s199
        %s201 = sand.u32 %s43, 1
        %s202 = smul.addr %s201, 8
        %s203 = scalar_lea.vmem [#allocation2], %s202
        // Predicated region
        $region33: #{tpu_custom_call.1} parent=31 // pred_check
          %p204 = pneg %p56
        $region34: #{tpu_custom_call.1} parent=31 // pred_check_branch
          %206 = sbr.rel (%p204) target = $region36
        $region35: #{tpu_custom_call.1} parent=31 // pred_region
          %207 = dma.done %s200, 128
        $region36: #{tpu_custom_call.1} parent=31 // pred_fallthru
          _
        // Predicated region
        $region37: #{tpu_custom_call.1} parent=31 // pred_check
          %p208 = pneg %p77
        $region38: #{tpu_custom_call.1} parent=31 // pred_check_branch
          %210 = sbr.rel (%p208) target = $region40
        $region39: #{tpu_custom_call.1} parent=31 // pred_region
          %211 = dma.done [#allocation6], 12288
        $region40: #{tpu_custom_call.1} parent=31 // pred_fallthru
          _
        // Predicated region
        $region41: #{tpu_custom_call.1} parent=31 // pred_check
          %p212 = pneg %p98
        $region42: #{tpu_custom_call.1} parent=31 // pred_check_branch
          %214 = sbr.rel (%p212) target = $region44
        $region43: #{tpu_custom_call.1} parent=31 // pred_region
          %215 = dma.done [#allocation6], 192
        $region44: #{tpu_custom_call.1} parent=31 // pred_fallthru
          _
        %s216 = sand.u32 %s43, 1
        %s217 = scalar_lea.sflag [#allocation3], %s216
        %s218 = sand.u32 %s43, 1
        %s219 = smul.addr %s218, 8
        %s220 = scalar_lea.vmem [#allocation2], %s219
        %p221 = pneg %p56
        %p222 = pneg %p53
        %p223 = pneg %p77
        %p224 = pneg %p74
        %p225 = pneg %p98
        %p226 = pneg %p95
        %p227 = pneg %p126
        %p228 = pneg %p123
        %s229 = sand.u32 %s113, 1
        %s230 = scalar_lea.sflag [#allocation4], %s229
        %s231 = sand.u32 %s113, 1
        %s232 = smul.addr %s231, 96
        %s233 = scalar_lea.vmem [#allocation8], %s232
        %s234 = smul.u32 2, %s26
        %s235 = smul.u32 2, %s26
        %v237 = vld [vmem:[%s203] sm:$0xf]
        %v238 = vld [vmem:[%s203 + $0x4] sm:$0xf]
        %v239 = vld [vmem:[#allocation5] sm:$0xff]
        %v240 = vld [vmem:[#allocation5 + $0x8] sm:$0xff]
        %v241 = vld [vmem:[#allocation5 + $0x10] sm:$0xff]
        %v242 = vld [vmem:[#allocation5 + $0x18] sm:$0xff]
        %v243 = vld [vmem:[#allocation5 + $0x20] sm:$0xff]
        %v244 = vld [vmem:[#allocation5 + $0x28] sm:$0xff]
        %v245 = vld [vmem:[#allocation5 + $0x30] sm:$0xff]
        %v246 = vld [vmem:[#allocation5 + $0x38] sm:$0xff]
        %v247 = vld [vmem:[#allocation5 + $0x40] sm:$0xff]
        %v248 = vld [vmem:[#allocation5 + $0x48] sm:$0xff]
        %v249 = vld [vmem:[#allocation5 + $0x50] sm:$0xff]
        %v250 = vld [vmem:[#allocation5 + $0x58] sm:$0xff]
        %v251 = vld [vmem:[#allocation5 + $0x60] sm:$0xff]
        %v252 = vld [vmem:[#allocation5 + $0x68] sm:$0xff]
        %v253 = vld [vmem:[#allocation5 + $0x70] sm:$0xff]
        %v254 = vld [vmem:[#allocation5 + $0x78] sm:$0xff]
        %v255 = vld [vmem:[#allocation5 + $0x80] sm:$0xff]
        %v256 = vld [vmem:[#allocation5 + $0x88] sm:$0xff]
        %v257 = vld [vmem:[#allocation5 + $0x90] sm:$0xff]
        %v258 = vld [vmem:[#allocation5 + $0x98] sm:$0xff]
        %v259 = vld [vmem:[#allocation5 + $0xa0] sm:$0xff]
        %v260 = vld [vmem:[#allocation5 + $0xa8] sm:$0xff]
        %v261 = vld [vmem:[#allocation5 + $0xb0] sm:$0xff]
        %v262 = vld [vmem:[#allocation5 + $0xb8] sm:$0xff]
        %v263 = vld [vmem:[#allocation5 + $0xc0] sm:$0xff]
        %v264 = vld [vmem:[#allocation5 + $0xc8] sm:$0xff]
        %v265 = vld [vmem:[#allocation5 + $0xd0] sm:$0xff]
        %v266 = vld [vmem:[#allocation5 + $0xd8] sm:$0xff]
        %v267 = vld [vmem:[#allocation5 + $0xe0] sm:$0xff]
        %v268 = vld [vmem:[#allocation5 + $0xe8] sm:$0xff]
        %v269 = vld [vmem:[#allocation5 + $0xf0] sm:$0xff]
        %v270 = vld [vmem:[#allocation5 + $0xf8] sm:$0xff]
        %v271 = vld [vmem:[#allocation5 + $0x100] sm:$0xff]
        %v272 = vld [vmem:[#allocation5 + $0x108] sm:$0xff]
        %v273 = vld [vmem:[#allocation5 + $0x110] sm:$0xff]
        %v274 = vld [vmem:[#allocation5 + $0x118] sm:$0xff]
        %v275 = vld [vmem:[#allocation5 + $0x120] sm:$0xff]
        %v276 = vld [vmem:[#allocation5 + $0x128] sm:$0xff]
        %v277 = vld [vmem:[#allocation5 + $0x130] sm:$0xff]
        %v278 = vld [vmem:[#allocation5 + $0x138] sm:$0xff]
        %v279 = vld [vmem:[#allocation5 + $0x140] sm:$0xff]
        %v280 = vld [vmem:[#allocation5 + $0x148] sm:$0xff]
        %v281 = vld [vmem:[#allocation5 + $0x150] sm:$0xff]
        %v282 = vld [vmem:[#allocation5 + $0x158] sm:$0xff]
        %v283 = vld [vmem:[#allocation5 + $0x160] sm:$0xff]
        %v284 = vld [vmem:[#allocation5 + $0x168] sm:$0xff]
        %v285 = vld [vmem:[#allocation5 + $0x170] sm:$0xff]
        %v286 = vld [vmem:[#allocation5 + $0x178] sm:$0xff]
        %v287 = vld [vmem:[#allocation5 + $0x180] sm:$0xff]
        %v288 = vld [vmem:[#allocation5 + $0x188] sm:$0xff]
        %v289 = vld [vmem:[#allocation5 + $0x190] sm:$0xff]
        %v290 = vld [vmem:[#allocation5 + $0x198] sm:$0xff]
        %v291 = vld [vmem:[#allocation5 + $0x1a0] sm:$0xff]
        %v292 = vld [vmem:[#allocation5 + $0x1a8] sm:$0xff]
        %v293 = vld [vmem:[#allocation5 + $0x1b0] sm:$0xff]
        %v294 = vld [vmem:[#allocation5 + $0x1b8] sm:$0xff]
        %v295 = vld [vmem:[#allocation5 + $0x1c0] sm:$0xff]
        %v296 = vld [vmem:[#allocation5 + $0x1c8] sm:$0xff]
        %v297 = vld [vmem:[#allocation5 + $0x1d0] sm:$0xff]
        %v298 = vld [vmem:[#allocation5 + $0x1d8] sm:$0xff]
        %v299 = vld [vmem:[#allocation5 + $0x1e0] sm:$0xff]
        %v300 = vld [vmem:[#allocation5 + $0x1e8] sm:$0xff]
        %v301 = vld [vmem:[#allocation5 + $0x1f0] sm:$0xff]
        %v302 = vld [vmem:[#allocation5 + $0x1f8] sm:$0xff]
        %v303 = vld [vmem:[#allocation5 + $0x200] sm:$0xff]
        %v304 = vld [vmem:[#allocation5 + $0x208] sm:$0xff]
        %v305 = vld [vmem:[#allocation5 + $0x210] sm:$0xff]
        %v306 = vld [vmem:[#allocation5 + $0x218] sm:$0xff]
        %v307 = vld [vmem:[#allocation5 + $0x220] sm:$0xff]
        %v308 = vld [vmem:[#allocation5 + $0x228] sm:$0xff]
        %v309 = vld [vmem:[#allocation5 + $0x230] sm:$0xff]
        %v310 = vld [vmem:[#allocation5 + $0x238] sm:$0xff]
        %v311 = vld [vmem:[#allocation5 + $0x240] sm:$0xff]
        %v312 = vld [vmem:[#allocation5 + $0x248] sm:$0xff]
        %v313 = vld [vmem:[#allocation5 + $0x250] sm:$0xff]
        %v314 = vld [vmem:[#allocation5 + $0x258] sm:$0xff]
        %v315 = vld [vmem:[#allocation5 + $0x260] sm:$0xff]
        %v316 = vld [vmem:[#allocation5 + $0x268] sm:$0xff]
        %v317 = vld [vmem:[#allocation5 + $0x270] sm:$0xff]
        %v318 = vld [vmem:[#allocation5 + $0x278] sm:$0xff]
        %v319 = vld [vmem:[#allocation5 + $0x280] sm:$0xff]
        %v320 = vld [vmem:[#allocation5 + $0x288] sm:$0xff]
        %v321 = vld [vmem:[#allocation5 + $0x290] sm:$0xff]
        %v322 = vld [vmem:[#allocation5 + $0x298] sm:$0xff]
        %v323 = vld [vmem:[#allocation5 + $0x2a0] sm:$0xff]
        %v324 = vld [vmem:[#allocation5 + $0x2a8] sm:$0xff]
        %v325 = vld [vmem:[#allocation5 + $0x2b0] sm:$0xff]
        %v326 = vld [vmem:[#allocation5 + $0x2b8] sm:$0xff]
        %v327 = vld [vmem:[#allocation5 + $0x2c0] sm:$0xff]
        %v328 = vld [vmem:[#allocation5 + $0x2c8] sm:$0xff]
        %v329 = vld [vmem:[#allocation5 + $0x2d0] sm:$0xff]
        %v330 = vld [vmem:[#allocation5 + $0x2d8] sm:$0xff]
        %v331 = vld [vmem:[#allocation5 + $0x2e0] sm:$0xff]
        %v332 = vld [vmem:[#allocation5 + $0x2e8] sm:$0xff]
        %v333 = vld [vmem:[#allocation5 + $0x2f0] sm:$0xff]
        %v334 = vld [vmem:[#allocation5 + $0x2f8] sm:$0xff]
        %v335 = vld [vmem:[#allocation7] sm:$0xff]
        %v336 = vld [vmem:[#allocation7 + $0x8] sm:$0xf]
        %v339 = vlaneseq
        %v340 = vshrl.u32 %v339, 7
        %v341 = vsub.s32 0, %v340
        %v342 = vrot.slane %v335, %v341
        %v343 = vlaneseq
        %v344 = vshrl.u32 %v343, 7
        %v345 = vsub.s32 1, %v344
        %v346 = vrot.slane %v335, %v345
        %v347 = vlaneseq
        %v348 = vshrl.u32 %v347, 7
        %v349 = vsub.s32 2, %v348
        %v350 = vrot.slane %v335, %v349
        %v351 = vlaneseq
        %v352 = vshrl.u32 %v351, 7
        %v353 = vsub.s32 3, %v352
        %v354 = vrot.slane %v335, %v353
        %v355 = vlaneseq
        %v356 = vshrl.u32 %v355, 7
        %v357 = vsub.s32 4, %v356
        %v358 = vrot.slane %v335, %v357
        %v359 = vlaneseq
        %v360 = vshrl.u32 %v359, 7
        %v361 = vsub.s32 5, %v360
        %v362 = vrot.slane %v335, %v361
        %v363 = vlaneseq
        %v364 = vshrl.u32 %v363, 7
        %v365 = vsub.s32 6, %v364
        %v366 = vrot.slane %v335, %v365
        %v367 = vlaneseq
        %v368 = vshrl.u32 %v367, 7
        %v369 = vsub.s32 7, %v368
        %v370 = vrot.slane %v335, %v369
        %v371 = vlaneseq
        %v372 = vshrl.u32 %v371, 7
        %v373 = vsub.s32 0, %v372
        %v374 = vrot.slane %v336, %v373
        %v375 = vlaneseq
        %v376 = vshrl.u32 %v375, 7
        %v377 = vsub.s32 1, %v376
        %v378 = vrot.slane %v336, %v377
        %v379 = vlaneseq
        %v380 = vshrl.u32 %v379, 7
        %v381 = vsub.s32 2, %v380
        %v382 = vrot.slane %v336, %v381
        %v383 = vlaneseq
        %v384 = vshrl.u32 %v383, 7
        %v385 = vsub.s32 3, %v384
        %v386 = vrot.slane %v336, %v385
        %v401 = vunpack.c.l.b16 %v237
        %v402 = vunpack.c.l.b16 %v238
        %v403 = vpack.c.b16 %v402, %v401
        %v501 = vunpack.c.l.b16 %v239
        %v502 = vunpack.c.h.b16 %v239
        %v503 = vunpack.c.l.b16 %v240
        %v504 = vunpack.c.h.b16 %v240
        %v505 = vunpack.c.l.b16 %v241
        %v506 = vunpack.c.h.b16 %v241
        %v507 = vunpack.c.l.b16 %v242
        %v508 = vunpack.c.h.b16 %v242
        %v509 = vunpack.c.l.b16 %v243
        %v510 = vunpack.c.h.b16 %v243
        %v511 = vunpack.c.l.b16 %v244
        %v512 = vunpack.c.h.b16 %v244
        %v513 = vunpack.c.l.b16 %v245
        %v514 = vunpack.c.h.b16 %v245
        %v515 = vunpack.c.l.b16 %v246
        %v516 = vunpack.c.h.b16 %v246
        %v517 = vunpack.c.l.b16 %v247
        %v518 = vunpack.c.h.b16 %v247
        %v519 = vunpack.c.l.b16 %v248
        %v520 = vunpack.c.h.b16 %v248
        %v521 = vunpack.c.l.b16 %v249
        %v522 = vunpack.c.h.b16 %v249
        %v523 = vunpack.c.l.b16 %v250
        %v524 = vunpack.c.h.b16 %v250
        %v525 = vunpack.c.l.b16 %v251
        %v526 = vunpack.c.h.b16 %v251
        %v527 = vunpack.c.l.b16 %v252
        %v528 = vunpack.c.h.b16 %v252
        %v529 = vunpack.c.l.b16 %v253
        %v530 = vunpack.c.h.b16 %v253
        %v531 = vunpack.c.l.b16 %v254
        %v532 = vunpack.c.h.b16 %v254
        %v533 = vunpack.c.l.b16 %v255
        %v534 = vunpack.c.h.b16 %v255
        %v535 = vunpack.c.l.b16 %v256
        %v536 = vunpack.c.h.b16 %v256
        %v537 = vunpack.c.l.b16 %v257
        %v538 = vunpack.c.h.b16 %v257
        %v539 = vunpack.c.l.b16 %v258
        %v540 = vunpack.c.h.b16 %v258
        %v541 = vunpack.c.l.b16 %v259
        %v542 = vunpack.c.h.b16 %v259
        %v543 = vunpack.c.l.b16 %v260
        %v544 = vunpack.c.h.b16 %v260
        %v545 = vunpack.c.l.b16 %v261
        %v546 = vunpack.c.h.b16 %v261
        %v547 = vunpack.c.l.b16 %v262
        %v548 = vunpack.c.h.b16 %v262
        %v549 = vunpack.c.l.b16 %v263
        %v550 = vunpack.c.h.b16 %v263
        %v551 = vunpack.c.l.b16 %v264
        %v552 = vunpack.c.h.b16 %v264
        %v553 = vunpack.c.l.b16 %v265
        %v554 = vunpack.c.h.b16 %v265
        %v555 = vunpack.c.l.b16 %v266
        %v556 = vunpack.c.h.b16 %v266
        %v557 = vunpack.c.l.b16 %v267
        %v558 = vunpack.c.h.b16 %v267
        %v559 = vunpack.c.l.b16 %v268
        %v560 = vunpack.c.h.b16 %v268
        %v561 = vunpack.c.l.b16 %v269
        %v562 = vunpack.c.h.b16 %v269
        %v563 = vunpack.c.l.b16 %v270
        %v564 = vunpack.c.h.b16 %v270
        %v565 = vunpack.c.l.b16 %v271
        %v566 = vunpack.c.h.b16 %v271
        %v567 = vunpack.c.l.b16 %v272
        %v568 = vunpack.c.h.b16 %v272
        %v569 = vunpack.c.l.b16 %v273
        %v570 = vunpack.c.h.b16 %v273
        %v571 = vunpack.c.l.b16 %v274
        %v572 = vunpack.c.h.b16 %v274
        %v573 = vunpack.c.l.b16 %v275
        %v574 = vunpack.c.h.b16 %v275
        %v575 = vunpack.c.l.b16 %v276
        %v576 = vunpack.c.h.b16 %v276
        %v577 = vunpack.c.l.b16 %v277
        %v578 = vunpack.c.h.b16 %v277
        %v579 = vunpack.c.l.b16 %v278
        %v580 = vunpack.c.h.b16 %v278
        %v581 = vunpack.c.l.b16 %v279
        %v582 = vunpack.c.h.b16 %v279
        %v583 = vunpack.c.l.b16 %v280
        %v584 = vunpack.c.h.b16 %v280
        %v585 = vunpack.c.l.b16 %v281
        %v586 = vunpack.c.h.b16 %v281
        %v587 = vunpack.c.l.b16 %v282
        %v588 = vunpack.c.h.b16 %v282
        %v589 = vunpack.c.l.b16 %v283
        %v590 = vunpack.c.h.b16 %v283
        %v591 = vunpack.c.l.b16 %v284
        %v592 = vunpack.c.h.b16 %v284
        %v593 = vunpack.c.l.b16 %v285
        %v594 = vunpack.c.h.b16 %v285
        %v595 = vunpack.c.l.b16 %v286
        %v596 = vunpack.c.h.b16 %v286
        %v597 = vunpack.c.l.b16 %v287
        %v598 = vunpack.c.h.b16 %v287
        %v599 = vunpack.c.l.b16 %v288
        %v600 = vunpack.c.h.b16 %v288
        %v601 = vunpack.c.l.b16 %v289
        %v602 = vunpack.c.h.b16 %v289
        %v603 = vunpack.c.l.b16 %v290
        %v604 = vunpack.c.h.b16 %v290
        %v605 = vunpack.c.l.b16 %v291
        %v606 = vunpack.c.h.b16 %v291
        %v607 = vunpack.c.l.b16 %v292
        %v608 = vunpack.c.h.b16 %v292
        %v609 = vunpack.c.l.b16 %v293
        %v610 = vunpack.c.h.b16 %v293
        %v611 = vunpack.c.l.b16 %v294
        %v612 = vunpack.c.h.b16 %v294
        %v613 = vunpack.c.l.b16 %v295
        %v614 = vunpack.c.h.b16 %v295
        %v615 = vunpack.c.l.b16 %v296
        %v616 = vunpack.c.h.b16 %v296
        %v617 = vunpack.c.l.b16 %v297
        %v618 = vunpack.c.h.b16 %v297
        %v619 = vunpack.c.l.b16 %v298
        %v620 = vunpack.c.h.b16 %v298
        %v621 = vunpack.c.l.b16 %v299
        %v622 = vunpack.c.h.b16 %v299
        %v623 = vunpack.c.l.b16 %v300
        %v624 = vunpack.c.h.b16 %v300
        %v625 = vunpack.c.l.b16 %v301
        %v626 = vunpack.c.h.b16 %v301
        %v627 = vunpack.c.l.b16 %v302
        %v628 = vunpack.c.h.b16 %v302
        %v629 = vunpack.c.l.b16 %v303
        %v630 = vunpack.c.h.b16 %v303
        %v631 = vunpack.c.l.b16 %v304
        %v632 = vunpack.c.h.b16 %v304
        %v633 = vunpack.c.l.b16 %v305
        %v634 = vunpack.c.h.b16 %v305
        %v635 = vunpack.c.l.b16 %v306
        %v636 = vunpack.c.h.b16 %v306
        %v637 = vunpack.c.l.b16 %v307
        %v638 = vunpack.c.h.b16 %v307
        %v639 = vunpack.c.l.b16 %v308
        %v640 = vunpack.c.h.b16 %v308
        %v641 = vunpack.c.l.b16 %v309
        %v642 = vunpack.c.h.b16 %v309
        %v643 = vunpack.c.l.b16 %v310
        %v644 = vunpack.c.h.b16 %v310
        %v645 = vunpack.c.l.b16 %v311
        %v646 = vunpack.c.h.b16 %v311
        %v647 = vunpack.c.l.b16 %v312
        %v648 = vunpack.c.h.b16 %v312
        %v649 = vunpack.c.l.b16 %v313
        %v650 = vunpack.c.h.b16 %v313
        %v651 = vunpack.c.l.b16 %v314
        %v652 = vunpack.c.h.b16 %v314
        %v653 = vunpack.c.l.b16 %v315
        %v654 = vunpack.c.h.b16 %v315
        %v655 = vunpack.c.l.b16 %v316
        %v656 = vunpack.c.h.b16 %v316
        %v657 = vunpack.c.l.b16 %v317
        %v658 = vunpack.c.h.b16 %v317
        %v659 = vunpack.c.l.b16 %v318
        %v660 = vunpack.c.h.b16 %v318
        %v661 = vunpack.c.l.b16 %v319
        %v662 = vunpack.c.h.b16 %v319
        %v663 = vunpack.c.l.b16 %v320
        %v664 = vunpack.c.h.b16 %v320
        %v665 = vunpack.c.l.b16 %v321
        %v666 = vunpack.c.h.b16 %v321
        %v667 = vunpack.c.l.b16 %v322
        %v668 = vunpack.c.h.b16 %v322
        %v669 = vunpack.c.l.b16 %v323
        %v670 = vunpack.c.h.b16 %v323
        %v671 = vunpack.c.l.b16 %v324
        %v672 = vunpack.c.h.b16 %v324
        %v673 = vunpack.c.l.b16 %v325
        %v674 = vunpack.c.h.b16 %v325
        %v675 = vunpack.c.l.b16 %v326
        %v676 = vunpack.c.h.b16 %v326
        %v677 = vunpack.c.l.b16 %v327
        %v678 = vunpack.c.h.b16 %v327
        %v679 = vunpack.c.l.b16 %v328
        %v680 = vunpack.c.h.b16 %v328
        %v681 = vunpack.c.l.b16 %v329
        %v682 = vunpack.c.h.b16 %v329
        %v683 = vunpack.c.l.b16 %v330
        %v684 = vunpack.c.h.b16 %v330
        %v685 = vunpack.c.l.b16 %v331
        %v686 = vunpack.c.h.b16 %v331
        %v687 = vunpack.c.l.b16 %v332
        %v688 = vunpack.c.h.b16 %v332
        %v689 = vunpack.c.l.b16 %v333
        %v690 = vunpack.c.h.b16 %v333
        %v691 = vunpack.c.l.b16 %v334
        %v692 = vunpack.c.h.b16 %v334
        %v693 = vpack.c.b16 %v513, %v501
        %v694 = vpack.c.b16 %v514, %v502
        %v695 = vpack.c.b16 %v515, %v503
        %v696 = vpack.c.b16 %v516, %v504
        %v697 = vpack.c.b16 %v517, %v505
        %v698 = vpack.c.b16 %v518, %v506
        %v699 = vpack.c.b16 %v519, %v507
        %v700 = vpack.c.b16 %v520, %v508
        %v701 = vpack.c.b16 %v521, %v509
        %v702 = vpack.c.b16 %v522, %v510
        %v703 = vpack.c.b16 %v523, %v511
        %v704 = vpack.c.b16 %v524, %v512
        %v705 = vpack.c.b16 %v537, %v525
        %v706 = vpack.c.b16 %v538, %v526
        %v707 = vpack.c.b16 %v539, %v527
        %v708 = vpack.c.b16 %v540, %v528
        %v709 = vpack.c.b16 %v541, %v529
        %v710 = vpack.c.b16 %v542, %v530
        %v711 = vpack.c.b16 %v543, %v531
        %v712 = vpack.c.b16 %v544, %v532
        %v713 = vpack.c.b16 %v545, %v533
        %v714 = vpack.c.b16 %v546, %v534
        %v715 = vpack.c.b16 %v547, %v535
        %v716 = vpack.c.b16 %v548, %v536
        %v717 = vpack.c.b16 %v561, %v549
        %v718 = vpack.c.b16 %v562, %v550
        %v719 = vpack.c.b16 %v563, %v551
        %v720 = vpack.c.b16 %v564, %v552
        %v721 = vpack.c.b16 %v565, %v553
        %v722 = vpack.c.b16 %v566, %v554
        %v723 = vpack.c.b16 %v567, %v555
        %v724 = vpack.c.b16 %v568, %v556
        %v725 = vpack.c.b16 %v569, %v557
        %v726 = vpack.c.b16 %v570, %v558
        %v727 = vpack.c.b16 %v571, %v559
        %v728 = vpack.c.b16 %v572, %v560
        %v729 = vpack.c.b16 %v585, %v573
        %v730 = vpack.c.b16 %v586, %v574
        %v731 = vpack.c.b16 %v587, %v575
        %v732 = vpack.c.b16 %v588, %v576
        %v733 = vpack.c.b16 %v589, %v577
        %v734 = vpack.c.b16 %v590, %v578
        %v735 = vpack.c.b16 %v591, %v579
        %v736 = vpack.c.b16 %v592, %v580
        %v737 = vpack.c.b16 %v593, %v581
        %v738 = vpack.c.b16 %v594, %v582
        %v739 = vpack.c.b16 %v595, %v583
        %v740 = vpack.c.b16 %v596, %v584
        %v741 = vpack.c.b16 %v609, %v597
        %v742 = vpack.c.b16 %v610, %v598
        %v743 = vpack.c.b16 %v611, %v599
        %v744 = vpack.c.b16 %v612, %v600
        %v745 = vpack.c.b16 %v613, %v601
        %v746 = vpack.c.b16 %v614, %v602
        %v747 = vpack.c.b16 %v615, %v603
        %v748 = vpack.c.b16 %v616, %v604
        %v749 = vpack.c.b16 %v617, %v605
        %v750 = vpack.c.b16 %v618, %v606
        %v751 = vpack.c.b16 %v619, %v607
        %v752 = vpack.c.b16 %v620, %v608
        %v753 = vpack.c.b16 %v633, %v621
        %v754 = vpack.c.b16 %v634, %v622
        %v755 = vpack.c.b16 %v635, %v623
        %v756 = vpack.c.b16 %v636, %v624
        %v757 = vpack.c.b16 %v637, %v625
        %v758 = vpack.c.b16 %v638, %v626
        %v759 = vpack.c.b16 %v639, %v627
        %v760 = vpack.c.b16 %v640, %v628
        %v761 = vpack.c.b16 %v641, %v629
        %v762 = vpack.c.b16 %v642, %v630
        %v763 = vpack.c.b16 %v643, %v631
        %v764 = vpack.c.b16 %v644, %v632
        %v765 = vpack.c.b16 %v657, %v645
        %v766 = vpack.c.b16 %v658, %v646
        %v767 = vpack.c.b16 %v659, %v647
        %v768 = vpack.c.b16 %v660, %v648
        %v769 = vpack.c.b16 %v661, %v649
        %v770 = vpack.c.b16 %v662, %v650
        %v771 = vpack.c.b16 %v663, %v651
        %v772 = vpack.c.b16 %v664, %v652
        %v773 = vpack.c.b16 %v665, %v653
        %v774 = vpack.c.b16 %v666, %v654
        %v775 = vpack.c.b16 %v667, %v655
        %v776 = vpack.c.b16 %v668, %v656
        %v777 = vpack.c.b16 %v681, %v669
        %v778 = vpack.c.b16 %v682, %v670
        %v779 = vpack.c.b16 %v683, %v671
        %v780 = vpack.c.b16 %v684, %v672
        %v781 = vpack.c.b16 %v685, %v673
        %v782 = vpack.c.b16 %v686, %v674
        %v783 = vpack.c.b16 %v687, %v675
        %v784 = vpack.c.b16 %v688, %v676
        %v785 = vpack.c.b16 %v689, %v677
        %v786 = vpack.c.b16 %v690, %v678
        %v787 = vpack.c.b16 %v691, %v679
        %v788 = vpack.c.b16 %v692, %v680
        %885 = vmatprep.subr.bf16.mxu0 %v694
        %886 = vmatpush1.bf16.msra.mxu0 %v693
        %887 = vmatprep.subr.bf16.mxu0 %v706
        %888 = vmatpush1.bf16.msra.mxu0 %v705
        %889 = vmatprep.subr.bf16.mxu0 %v718
        %890 = vmatpush1.bf16.msra.mxu0 %v717
        %891 = vmatprep.subr.bf16.mxu0 %v730
        %892 = vmatpush1.bf16.msra.mxu0 %v729
        %893 = vmatprep.subr.bf16.mxu0 %v742
        %894 = vmatpush1.bf16.msra.mxu0 %v741
        %895 = vmatprep.subr.bf16.mxu0 %v754
        %896 = vmatpush1.bf16.msra.mxu0 %v753
        %897 = vmatprep.subr.bf16.mxu0 %v766
        %898 = vmatpush1.bf16.msra.mxu0 %v765
        %899 = vmatprep.subr.bf16.mxu0 %v778
        %900 = vmatpush1.bf16.msra.mxu0 %v777
        %901 = vmatprep.subr.bf16.mxu0 0
        %902 = vmatpush1.bf16.msra.mxu0 0
        %903 = vmatprep.subr.bf16.mxu0 0
        %904 = vmatpush1.bf16.msra.mxu0 0
        %905 = vmatprep.subr.bf16.mxu0 0
        %906 = vmatpush1.bf16.msra.mxu0 0
        %907 = vmatprep.subr.bf16.mxu0 0
        %908 = vmatpush1.bf16.msra.mxu0 0
        %909 = vmatprep.subr.bf16.mxu0 0
        %910 = vmatpush1.bf16.msra.mxu0 0
        %911 = vmatprep.subr.bf16.mxu0 0
        %912 = vmatpush1.bf16.msra.mxu0 0
        %913 = vmatprep.subr.bf16.mxu0 0
        %914 = vmatpush1.bf16.msra.mxu0 0
        %915 = vmatprep.subr.bf16.mxu0 0
        %916 = vmatpush1.bf16.msra.mxu0 0
        %917 = vmatprep.mubr.bf16.mxu0 0
        %918 = vmatmul.mubr.bf16.gmra.mrb[0].mxu0 %v403
        %v919 = vpop.f32.mrb[0].mxu0
        %v920 = vadd.f32 %v342, %v919
        %v921 = vpop.f32.mrb[0].mxu0
        %v922 = vadd.f32 %v346, %v921
        %v923 = vpop.f32.mrb[0].mxu0
        %v924 = vadd.f32 %v342, %v923
        %v925 = vpop.f32.mrb[0].mxu0
        %v926 = vadd.f32 %v346, %v925
        %927 = vdwg.mxu0
        %928 = vmatprep.subr.bf16.mxu0 %v696
        %929 = vmatpush1.bf16.msra.mxu0 %v695
        %930 = vmatprep.subr.bf16.mxu0 %v708
        %931 = vmatpush1.bf16.msra.mxu0 %v707
        %932 = vmatprep.subr.bf16.mxu0 %v720
        %933 = vmatpush1.bf16.msra.mxu0 %v719
        %934 = vmatprep.subr.bf16.mxu0 %v732
        %935 = vmatpush1.bf16.msra.mxu0 %v731
        %936 = vmatprep.subr.bf16.mxu0 %v744
        %937 = vmatpush1.bf16.msra.mxu0 %v743
        %938 = vmatprep.subr.bf16.mxu0 %v756
        %939 = vmatpush1.bf16.msra.mxu0 %v755
        %940 = vmatprep.subr.bf16.mxu0 %v768
        %941 = vmatpush1.bf16.msra.mxu0 %v767
        %942 = vmatprep.subr.bf16.mxu0 %v780
        %943 = vmatpush1.bf16.msra.mxu0 %v779
        %944 = vmatprep.subr.bf16.mxu0 0
        %945 = vmatpush1.bf16.msra.mxu0 0
        %946 = vmatprep.subr.bf16.mxu0 0
        %947 = vmatpush1.bf16.msra.mxu0 0
        %948 = vmatprep.subr.bf16.mxu0 0
        %949 = vmatpush1.bf16.msra.mxu0 0
        %950 = vmatprep.subr.bf16.mxu0 0
        %951 = vmatpush1.bf16.msra.mxu0 0
        %952 = vmatprep.subr.bf16.mxu0 0
        %953 = vmatpush1.bf16.msra.mxu0 0
        %954 = vmatprep.subr.bf16.mxu0 0
        %955 = vmatpush1.bf16.msra.mxu0 0
        %956 = vmatprep.subr.bf16.mxu0 0
        %957 = vmatpush1.bf16.msra.mxu0 0
        %958 = vmatprep.subr.bf16.mxu0 0
        %959 = vmatpush1.bf16.msra.mxu0 0
        %960 = vmatprep.mubr.bf16.mxu0 0
        %961 = vmatmul.mubr.bf16.gmra.mrb[0].mxu0 %v403
        %v962 = vpop.f32.mrb[0].mxu0
        %v963 = vadd.f32 %v350, %v962
        %v964 = vpop.f32.mrb[0].mxu0
        %v965 = vadd.f32 %v354, %v964
        %v966 = vpop.f32.mrb[0].mxu0
        %v967 = vadd.f32 %v350, %v966
        %v968 = vpop.f32.mrb[0].mxu0
        %v969 = vadd.f32 %v354, %v968
        %970 = vdwg.mxu0
        %971 = vmatprep.subr.bf16.mxu0 %v698
        %972 = vmatpush1.bf16.msra.mxu0 %v697
        %973 = vmatprep.subr.bf16.mxu0 %v710
        %974 = vmatpush1.bf16.msra.mxu0 %v709
        %975 = vmatprep.subr.bf16.mxu0 %v722
        %976 = vmatpush1.bf16.msra.mxu0 %v721
        %977 = vmatprep.subr.bf16.mxu0 %v734
        %978 = vmatpush1.bf16.msra.mxu0 %v733
        %979 = vmatprep.subr.bf16.mxu0 %v746
        %980 = vmatpush1.bf16.msra.mxu0 %v745
        %981 = vmatprep.subr.bf16.mxu0 %v758
        %982 = vmatpush1.bf16.msra.mxu0 %v757
        %983 = vmatprep.subr.bf16.mxu0 %v770
        %984 = vmatpush1.bf16.msra.mxu0 %v769
        %985 = vmatprep.subr.bf16.mxu0 %v782
        %986 = vmatpush1.bf16.msra.mxu0 %v781
        %987 = vmatprep.subr.bf16.mxu0 0
        %988 = vmatpush1.bf16.msra.mxu0 0
        %989 = vmatprep.subr.bf16.mxu0 0
        %990 = vmatpush1.bf16.msra.mxu0 0
        %991 = vmatprep.subr.bf16.mxu0 0
        %992 = vmatpush1.bf16.msra.mxu0 0
        %993 = vmatprep.subr.bf16.mxu0 0
        %994 = vmatpush1.bf16.msra.mxu0 0
        %995 = vmatprep.subr.bf16.mxu0 0
        %996 = vmatpush1.bf16.msra.mxu0 0
        %997 = vmatprep.subr.bf16.mxu0 0
        %998 = vmatpush1.bf16.msra.mxu0 0
        %999 = vmatprep.subr.bf16.mxu0 0
        %1000 = vmatpush1.bf16.msra.mxu0 0
        %1001 = vmatprep.subr.bf16.mxu0 0
        %1002 = vmatpush1.bf16.msra.mxu0 0
        %1003 = vmatprep.mubr.bf16.mxu0 0
        %1004 = vmatmul.mubr.bf16.gmra.mrb[0].mxu0 %v403
        %v1005 = vpop.f32.mrb[0].mxu0
        %v1006 = vadd.f32 %v358, %v1005
        %v1007 = vpop.f32.mrb[0].mxu0
        %v1008 = vadd.f32 %v362, %v1007
        %v1009 = vpop.f32.mrb[0].mxu0
        %v1010 = vadd.f32 %v358, %v1009
        %v1011 = vpop.f32.mrb[0].mxu0
        %v1012 = vadd.f32 %v362, %v1011
        %1013 = vdwg.mxu0
        %1014 = vmatprep.subr.bf16.mxu0 %v700
        %1015 = vmatpush1.bf16.msra.mxu0 %v699
        %1016 = vmatprep.subr.bf16.mxu0 %v712
        %1017 = vmatpush1.bf16.msra.mxu0 %v711
        %1018 = vmatprep.subr.bf16.mxu0 %v724
        %1019 = vmatpush1.bf16.msra.mxu0 %v723
        %1020 = vmatprep.subr.bf16.mxu0 %v736
        %1021 = vmatpush1.bf16.msra.mxu0 %v735
        %1022 = vmatprep.subr.bf16.mxu0 %v748
        %1023 = vmatpush1.bf16.msra.mxu0 %v747
        %1024 = vmatprep.subr.bf16.mxu0 %v760
        %1025 = vmatpush1.bf16.msra.mxu0 %v759
        %1026 = vmatprep.subr.bf16.mxu0 %v772
        %1027 = vmatpush1.bf16.msra.mxu0 %v771
        %1028 = vmatprep.subr.bf16.mxu0 %v784
        %1029 = vmatpush1.bf16.msra.mxu0 %v783
        %1030 = vmatprep.subr.bf16.mxu0 0
        %1031 = vmatpush1.bf16.msra.mxu0 0
        %1032 = vmatprep.subr.bf16.mxu0 0
        %1033 = vmatpush1.bf16.msra.mxu0 0
        %1034 = vmatprep.subr.bf16.mxu0 0
        %1035 = vmatpush1.bf16.msra.mxu0 0
        %1036 = vmatprep.subr.bf16.mxu0 0
        %1037 = vmatpush1.bf16.msra.mxu0 0
        %1038 = vmatprep.subr.bf16.mxu0 0
        %1039 = vmatpush1.bf16.msra.mxu0 0
        %1040 = vmatprep.subr.bf16.mxu0 0
        %1041 = vmatpush1.bf16.msra.mxu0 0
        %1042 = vmatprep.subr.bf16.mxu0 0
        %1043 = vmatpush1.bf16.msra.mxu0 0
        %1044 = vmatprep.subr.bf16.mxu0 0
        %1045 = vmatpush1.bf16.msra.mxu0 0
        %1046 = vmatprep.mubr.bf16.mxu0 0
        %1047 = vmatmul.mubr.bf16.gmra.mrb[0].mxu0 %v403
        %v1048 = vpop.f32.mrb[0].mxu0
        %v1049 = vadd.f32 %v366, %v1048
        %v1050 = vpop.f32.mrb[0].mxu0
        %v1051 = vadd.f32 %v370, %v1050
        %v1052 = vpop.f32.mrb[0].mxu0
        %v1053 = vadd.f32 %v366, %v1052
        %v1054 = vpop.f32.mrb[0].mxu0
        %v1055 = vadd.f32 %v370, %v1054
        %1056 = vdwg.mxu0
        %1057 = vmatprep.subr.bf16.mxu0 %v702
        %1058 = vmatpush1.bf16.msra.mxu0 %v701
        %1059 = vmatprep.subr.bf16.mxu0 %v714
        %1060 = vmatpush1.bf16.msra.mxu0 %v713
        %1061 = vmatprep.subr.bf16.mxu0 %v726
        %1062 = vmatpush1.bf16.msra.mxu0 %v725
        %1063 = vmatprep.subr.bf16.mxu0 %v738
        %1064 = vmatpush1.bf16.msra.mxu0 %v737
        %1065 = vmatprep.subr.bf16.mxu0 %v750
        %1066 = vmatpush1.bf16.msra.mxu0 %v749
        %1067 = vmatprep.subr.bf16.mxu0 %v762
        %1068 = vmatpush1.bf16.msra.mxu0 %v761
        %1069 = vmatprep.subr.bf16.mxu0 %v774
        %1070 = vmatpush1.bf16.msra.mxu0 %v773
        %1071 = vmatprep.subr.bf16.mxu0 %v786
        %1072 = vmatpush1.bf16.msra.mxu0 %v785
        %1073 = vmatprep.subr.bf16.mxu0 0
        %1074 = vmatpush1.bf16.msra.mxu0 0
        %1075 = vmatprep.subr.bf16.mxu0 0
        %1076 = vmatpush1.bf16.msra.mxu0 0
        %1077 = vmatprep.subr.bf16.mxu0 0
        %1078 = vmatpush1.bf16.msra.mxu0 0
        %1079 = vmatprep.subr.bf16.mxu0 0
        %1080 = vmatpush1.bf16.msra.mxu0 0
        %1081 = vmatprep.subr.bf16.mxu0 0
        %1082 = vmatpush1.bf16.msra.mxu0 0
        %1083 = vmatprep.subr.bf16.mxu0 0
        %1084 = vmatpush1.bf16.msra.mxu0 0
        %1085 = vmatprep.subr.bf16.mxu0 0
        %1086 = vmatpush1.bf16.msra.mxu0 0
        %1087 = vmatprep.subr.bf16.mxu0 0
        %1088 = vmatpush1.bf16.msra.mxu0 0
        %1089 = vmatprep.mubr.bf16.mxu0 0
        %1090 = vmatmul.mubr.bf16.gmra.mrb[0].mxu0 %v403
        %v1091 = vpop.f32.mrb[0].mxu0
        %v1092 = vadd.f32 %v374, %v1091
        %v1093 = vpop.f32.mrb[0].mxu0
        %v1094 = vadd.f32 %v378, %v1093
        %v1095 = vpop.f32.mrb[0].mxu0
        %v1096 = vadd.f32 %v374, %v1095
        %v1097 = vpop.f32.mrb[0].mxu0
        %v1098 = vadd.f32 %v378, %v1097
        %1099 = vdwg.mxu0
        %1100 = vmatprep.subr.bf16.mxu0 %v704
        %1101 = vmatpush1.bf16.msra.mxu0 %v703
        %1102 = vmatprep.subr.bf16.mxu0 %v716
        %1103 = vmatpush1.bf16.msra.mxu0 %v715
        %1104 = vmatprep.subr.bf16.mxu0 %v728
        %1105 = vmatpush1.bf16.msra.mxu0 %v727
        %1106 = vmatprep.subr.bf16.mxu0 %v740
        %1107 = vmatpush1.bf16.msra.mxu0 %v739
        %1108 = vmatprep.subr.bf16.mxu0 %v752
        %1109 = vmatpush1.bf16.msra.mxu0 %v751
        %1110 = vmatprep.subr.bf16.mxu0 %v764
        %1111 = vmatpush1.bf16.msra.mxu0 %v763
        %1112 = vmatprep.subr.bf16.mxu0 %v776
        %1113 = vmatpush1.bf16.msra.mxu0 %v775
        %1114 = vmatprep.subr.bf16.mxu0 %v788
        %1115 = vmatpush1.bf16.msra.mxu0 %v787
        %1116 = vmatprep.subr.bf16.mxu0 0
        %1117 = vmatpush1.bf16.msra.mxu0 0
        %1118 = vmatprep.subr.bf16.mxu0 0
        %1119 = vmatpush1.bf16.msra.mxu0 0
        %1120 = vmatprep.subr.bf16.mxu0 0
        %1121 = vmatpush1.bf16.msra.mxu0 0
        %1122 = vmatprep.subr.bf16.mxu0 0
        %1123 = vmatpush1.bf16.msra.mxu0 0
        %1124 = vmatprep.subr.bf16.mxu0 0
        %1125 = vmatpush1.bf16.msra.mxu0 0
        %1126 = vmatprep.subr.bf16.mxu0 0
        %1127 = vmatpush1.bf16.msra.mxu0 0
        %1128 = vmatprep.subr.bf16.mxu0 0
        %1129 = vmatpush1.bf16.msra.mxu0 0
        %1130 = vmatprep.subr.bf16.mxu0 0
        %1131 = vmatpush1.bf16.msra.mxu0 0
        %1132 = vmatprep.mubr.bf16.mxu0 0
        %1133 = vmatmul.mubr.bf16.gmra.mrb[0].mxu0 %v403
        %v1134 = vpop.f32.mrb[0].mxu0
        %v1135 = vadd.f32 %v382, %v1134
        %v1136 = vpop.f32.mrb[0].mxu0
        %v1137 = vadd.f32 %v386, %v1136
        %v1138 = vpop.f32.mrb[0].mxu0
        %v1139 = vadd.f32 %v382, %v1138
        %v1140 = vpop.f32.mrb[0].mxu0
        %v1141 = vadd.f32 %v386, %v1140
        %1142 = vdwg.mxu0
        %v1143 = vpack.c.bf16 %v924, %v920
        %v1144 = vpack.c.bf16 %v926, %v922
        %v1145 = vpack.c.bf16 %v967, %v963
        %v1146 = vpack.c.bf16 %v969, %v965
        %v1147 = vpack.c.bf16 %v1010, %v1006
        %v1148 = vpack.c.bf16 %v1012, %v1008
        %v1149 = vpack.c.bf16 %v1053, %v1049
        %v1150 = vpack.c.bf16 %v1055, %v1051
        %v1151 = vpack.c.bf16 %v1096, %v1092
        %v1152 = vpack.c.bf16 %v1098, %v1094
        %v1153 = vpack.c.bf16 %v1139, %v1135
        %v1154 = vpack.c.bf16 %v1141, %v1137
        %v1156 = vunpack.c.l.b16 %v1143
        %v1157 = vunpack.c.h.b16 %v1143
        %v1158 = vpack.c.b16 %v1156, %v1156
        %v1159 = vpack.c.b16 %v1157, %v1157
        %1162 = vst [vmem:[%s233] sm:$0xf] %v1158
        %1163 = vst [vmem:[%s233 + $0x4] sm:$0xf] %v1159
        %v1165 = vunpack.c.l.b16 %v1144
        %v1166 = vunpack.c.h.b16 %v1144
        %v1167 = vpack.c.b16 %v1165, %v1165
        %v1168 = vpack.c.b16 %v1166, %v1166
        %s1171 = scalar_lea.vmem %s233, 8 [#allocation8]
        %1172 = vst [vmem:[%s1171] sm:$0xf] %v1167
        %1173 = vst [vmem:[%s1171 + $0x4] sm:$0xf] %v1168
        %v1175 = vunpack.c.l.b16 %v1145
        %v1176 = vunpack.c.h.b16 %v1145
        %v1177 = vpack.c.b16 %v1175, %v1175
        %v1178 = vpack.c.b16 %v1176, %v1176
        %s1181 = scalar_lea.vmem %s233, 16 [#allocation8]
        %1182 = vst [vmem:[%s1181] sm:$0xf] %v1177
        %1183 = vst [vmem:[%s1181 + $0x4] sm:$0xf] %v1178
        %v1185 = vunpack.c.l.b16 %v1146
        %v1186 = vunpack.c.h.b16 %v1146
        %v1187 = vpack.c.b16 %v1185, %v1185
        %v1188 = vpack.c.b16 %v1186, %v1186
        %s1191 = scalar_lea.vmem %s233, 24 [#allocation8]
        %1192 = vst [vmem:[%s1191] sm:$0xf] %v1187
        %1193 = vst [vmem:[%s1191 + $0x4] sm:$0xf] %v1188
        %v1195 = vunpack.c.l.b16 %v1147
        %v1196 = vunpack.c.h.b16 %v1147
        %v1197 = vpack.c.b16 %v1195, %v1195
        %v1198 = vpack.c.b16 %v1196, %v1196
        %s1201 = scalar_lea.vmem %s233, 32 [#allocation8]
        %1202 = vst [vmem:[%s1201] sm:$0xf] %v1197
        %1203 = vst [vmem:[%s1201 + $0x4] sm:$0xf] %v1198
        %v1205 = vunpack.c.l.b16 %v1148
        %v1206 = vunpack.c.h.b16 %v1148
        %v1207 = vpack.c.b16 %v1205, %v1205
        %v1208 = vpack.c.b16 %v1206, %v1206
        %s1211 = scalar_lea.vmem %s233, 40 [#allocation8]
        %1212 = vst [vmem:[%s1211] sm:$0xf] %v1207
        %1213 = vst [vmem:[%s1211 + $0x4] sm:$0xf] %v1208
        %v1215 = vunpack.c.l.b16 %v1149
        %v1216 = vunpack.c.h.b16 %v1149
        %v1217 = vpack.c.b16 %v1215, %v1215
        %v1218 = vpack.c.b16 %v1216, %v1216
        %s1221 = scalar_lea.vmem %s233, 48 [#allocation8]
        %1222 = vst [vmem:[%s1221] sm:$0xf] %v1217
        %1223 = vst [vmem:[%s1221 + $0x4] sm:$0xf] %v1218
        %v1225 = vunpack.c.l.b16 %v1150
        %v1226 = vunpack.c.h.b16 %v1150
        %v1227 = vpack.c.b16 %v1225, %v1225
        %v1228 = vpack.c.b16 %v1226, %v1226
        %s1231 = scalar_lea.vmem %s233, 56 [#allocation8]
        %1232 = vst [vmem:[%s1231] sm:$0xf] %v1227
        %1233 = vst [vmem:[%s1231 + $0x4] sm:$0xf] %v1228
        %v1235 = vunpack.c.l.b16 %v1151
        %v1236 = vunpack.c.h.b16 %v1151
        %v1237 = vpack.c.b16 %v1235, %v1235
        %v1238 = vpack.c.b16 %v1236, %v1236
        %s1241 = scalar_lea.vmem %s233, 64 [#allocation8]
        %1242 = vst [vmem:[%s1241] sm:$0xf] %v1237
        %1243 = vst [vmem:[%s1241 + $0x4] sm:$0xf] %v1238
        %v1245 = vunpack.c.l.b16 %v1152
        %v1246 = vunpack.c.h.b16 %v1152
        %v1247 = vpack.c.b16 %v1245, %v1245
        %v1248 = vpack.c.b16 %v1246, %v1246
        %s1251 = scalar_lea.vmem %s233, 72 [#allocation8]
        %1252 = vst [vmem:[%s1251] sm:$0xf] %v1247
        %1253 = vst [vmem:[%s1251 + $0x4] sm:$0xf] %v1248
        %v1255 = vunpack.c.l.b16 %v1153
        %v1256 = vunpack.c.h.b16 %v1153
        %v1257 = vpack.c.b16 %v1255, %v1255
        %v1258 = vpack.c.b16 %v1256, %v1256
        %s1261 = scalar_lea.vmem %s233, 80 [#allocation8]
        %1262 = vst [vmem:[%s1261] sm:$0xf] %v1257
        %1263 = vst [vmem:[%s1261 + $0x4] sm:$0xf] %v1258
        %v1265 = vunpack.c.l.b16 %v1154
        %v1266 = vunpack.c.h.b16 %v1154
        %v1267 = vpack.c.b16 %v1265, %v1265
        %v1268 = vpack.c.b16 %v1266, %v1266
        %s1271 = scalar_lea.vmem %s233, 88 [#allocation8]
        %1272 = vst [vmem:[%s1271] sm:$0xf] %v1267
        %1273 = vst [vmem:[%s1271 + $0x4] sm:$0xf] %v1268
        %s1274 = sand.u32 %s113, 1
        %s1275 = scalar_lea.sflag [#allocation4], %s1274
        %s1276 = sand.u32 %s113, 1
        %s1277 = smul.addr %s1276, 96
        %s1278 = scalar_lea.vmem [#allocation8], %s1277
        // Predicated region
        $region45: #{tpu_custom_call.1} parent=31 // pred_check
          %p1279 = pneg %p123
        $region46: #{tpu_custom_call.1} parent=31 // pred_check_branch
          %1281 = sbr.rel (%p1279) target = $region48
        $region47: #{tpu_custom_call.1} parent=31 // pred_region
          %s1282 = smul.u32 2, %s26
          %s1284 = ssub.s32 1536, 1536
          %1285 = vsyncadd %s1275, %s1284
          %s1286 = smul.addr %s25, 24
          %s1287 = sadd.s32 %s1282, %s1286
          %s1288 = smul.addr %s1287, 64
          %s1289 = scalar_lea.hbm %s3, %s1288
          %s1290 = sshll.u32 %s1278, 4
          %s1291 = int_to_ptr.vmem [resolvable:$true] %s1290
          %1296 = dma.vmem_to_hbm [thread:$0]  %s1291, 1536, %s1289, %s1275, 64, 64, 4
        $region48: #{tpu_custom_call.1} parent=31 // pred_fallthru
          _
      $region32: #{tpu_custom_call.1} parent=5 // pred_fallthru
        _
      %p1297 = scmp.le.s32.totalorder 2, %s16
      // Predicated region
      $region49: #{tpu_custom_call.1} parent=5 // pred_check
        %p1298 = pneg %p1297
      $region50: #{tpu_custom_call.1} parent=5 // pred_check_branch
        %1300 = sbr.rel (%p1298) target = $region52
      $region51: #{tpu_custom_call.1} parent=5 // pred_region
        %s1301 = ssub.s32 %s16, 2
        // Predicated region
        $region53: #{tpu_custom_call.1} parent=51 // pred_check
          %p1302 = pneg %p129
        $region54: #{tpu_custom_call.1} parent=51 // pred_check_branch
          %1304 = sbr.rel (%p1302) target = $region56
        $region55: #{tpu_custom_call.1} parent=51 // pred_region
          %s1305 = sand.u32 %s114, 1
          %s1306 = scalar_lea.sflag [#allocation4], %s1305
          %s1307 = sand.u32 %s114, 1
          %s1308 = smul.addr %s1307, 96
          %s1309 = scalar_lea.vmem [#allocation8], %s1308
          %1310 = dma.done %s1306, 1536
        $region56: #{tpu_custom_call.1} parent=51 // pred_fallthru
          _
      $region52: #{tpu_custom_call.1} parent=5 // pred_fallthru
        _
    $region6: #{tpu_custom_call.1} parent=1 // loop_footer
      %s20 = sadd.s32 1, %s16
    $region7: #{tpu_custom_call.1} parent=1 // loop_footer_branch
      %15 = sbr.rel target = $region3
    $region8: #{tpu_custom_call.1} parent=1 // loop_exit
      _
    %1311 = vsyncpa [#allocation3], 1
    %s1312 = scalar_lea.sflag [#allocation3], 1
    %1313 = vsyncpa %s1312, 1
    %1314 = vsyncpa [#allocation6], 1
    %1315 = vsyncpa [#allocation4], 1
    %s1316 = scalar_lea.sflag [#allocation4], 1
    %1317 = vsyncpa %s1316, 1

</llo_original>
